<compile_context>
chip_gen: v7x
topology: tpu7x:2x2x1
jax: 0.10.0
libtpu: 0.0.40
codegen_flags: <defaults>
</compile_context>

<pallas_src>
import functools

import jax
import jax.numpy as jnp
from jax import lax
from jax.experimental import pallas as pl
from jax.experimental.pallas import tpu as pltpu


def _hard_triplet_kernel(xr_ref, xc_ref, lab_col_ref, lab_row_ref, out_ref,
                         ap2_ref, an2_ref, *,
                         margin, normalize_feature, n_true, n_pad, tm, tn,
                         gram_dtype):
    ri = pl.program_id(0)          # row-block index  ("parallel")
    cj = pl.program_id(1)          # col-block index  ("arbitrary" / reduction)

    # ---- init running max/min accumulators (squared-distance space) ----
    @pl.when(cj == 0)
    def _init():
        ap2_ref[...] = jnp.full(ap2_ref.shape, -jnp.inf, jnp.float32)
        an2_ref[...] = jnp.full(an2_ref.shape, jnp.inf, jnp.float32)

    xr = xr_ref[...].astype(jnp.float32)     # (TM, D) anchor rows
    xc = xc_ref[...].astype(jnp.float32)     # (TN, D) candidate rows

    if normalize_feature:
        # F.normalize(p=2, dim=1): x / max(||x||_2, 1e-12)
        inv_r = 1.0 / jnp.maximum(
            jnp.sqrt(jnp.sum(xr * xr, axis=1, keepdims=True)), 1e-12)
        inv_c = 1.0 / jnp.maximum(
            jnp.sqrt(jnp.sum(xc * xc, axis=1, keepdims=True)), 1e-12)
        xr = xr * inv_r
        xc = xc * inv_c

    xr_g = xr.astype(gram_dtype) if gram_dtype is not None else xr
    xc_g = xc.astype(gram_dtype) if gram_dtype is not None else xc

    # Contract dim 1 of both operands -> direct MXU feed, no explicit transpose.
    gram = lax.dot_general(xr_g, xc_g,
                           dimension_numbers=(((1,), (1,)), ((), ())),
                           preferred_element_type=jnp.float32)        # (TM, TN)

    if normalize_feature:
        # ||x_i|| == ||x_j|| == 1  ->  d^2 = 2 - 2 <x_i, x_j>
        dist2 = 2.0 - 2.0 * gram
    else:
        sq_r = jnp.sum(xr * xr, axis=1, keepdims=True)                # (TM, 1)
        # (1, TN) squared norms via a tiny matmul (avoids an in-kernel transpose)
        sq_c = lax.dot_general(jnp.ones((1, xc.shape[1]), jnp.float32), xc * xc,
                               dimension_numbers=(((1,), (1,)), ((), ())),
                               preferred_element_type=jnp.float32)    # (1, TN)
        dist2 = sq_r + sq_c - 2.0 * gram
    dist2 = jnp.maximum(dist2, 1e-12)                                 # clamp(min=1e-12)

    lab_r = lab_col_ref[...]                  # (TM, 1) int32
    lab_c = lab_row_ref[...]                  # (1, TN) int32
    same = lab_r == lab_c                     # (TM, TN) same-label mask

    # Global row/col ids of this tile (small (TM,1)/(1,TN) iotas) to exclude self.
    row_g = lax.broadcasted_iota(jnp.int32, (tm, 1), 0) + ri * tm
    col_g = lax.broadcasted_iota(jnp.int32, (1, tn), 1) + cj * tn
    not_self = row_g != col_g                 # (TM, TN)

    pos_mask = jnp.logical_and(same, not_self)
    neg_mask = jnp.logical_not(same)
    if n_pad != n_true:                       # static: padded columns never count
        col_valid = col_g < n_true            # (1, TN)
        pos_mask = jnp.logical_and(pos_mask, col_valid)
        neg_mask = jnp.logical_and(neg_mask, col_valid)

    # Mine in squared-distance space; sqrt only the (TM,1) winners at the end.
    ap2_ref[...] = jnp.maximum(
        ap2_ref[...],
        jnp.max(jnp.where(pos_mask, dist2, -jnp.inf), axis=1, keepdims=True))
    an2_ref[...] = jnp.minimum(
        an2_ref[...],
        jnp.min(jnp.where(neg_mask, dist2, jnp.inf), axis=1, keepdims=True))

    # ---- finalize on the last column block ----
    @pl.when(cj == pl.num_programs(1) - 1)
    def _finalize():
        ap2 = ap2_ref[...]
        an2 = an2_ref[...]
        has_pos = ap2 > -jnp.inf                          # any non-self positive seen
        dist_ap = jnp.where(has_pos,
                            jnp.sqrt(jnp.maximum(ap2, 1e-12)), 0.0)
        dist_an = jnp.sqrt(an2)                           # +inf if no negative exists
        out_ref[...] = jnp.maximum(dist_ap - dist_an + jnp.float32(margin), 0.0)


def hard_triplet_loss(embeddings, labels, *, margin=0.3, normalize_feature=True,
                      block=None, gram_dtype=None):
    """embeddings: (N, D) any float dtype, labels: (N,) int. Returns scalar f32 loss."""
    N, D = embeddings.shape
    if block is None:
        block = 128 if N <= 256 else 256          # lane-dense, MXU-friendly tiles
    n_pad = ((N + block - 1) // block) * block

    x = embeddings                                # native dtype; upcast inside kernel
    lab = labels.astype(jnp.int32)
    if n_pad != N:
        x = jnp.pad(x, ((0, n_pad - N), (0, 0)))
        lab = jnp.pad(lab, (0, n_pad - N))
    lab_col = lab.reshape(n_pad, 1)
    lab_row = lab.reshape(1, n_pad)

    tm = tn = block
    grid = (n_pad // tm, n_pad // tn)

    kernel = functools.partial(
        _hard_triplet_kernel,
        margin=float(margin),
        normalize_feature=bool(normalize_feature),
        n_true=N, n_pad=n_pad, tm=tm, tn=tn,
        gram_dtype=gram_dtype)

    per_row = pl.pallas_call(
        kernel,
        out_shape=jax.ShapeDtypeStruct((n_pad, 1), jnp.float32),
        grid_spec=pltpu.PrefetchScalarGridSpec(
            num_scalar_prefetch=0,
            grid=grid,
            in_specs=[
                pl.BlockSpec((tm, D), lambda ri, cj: (ri, 0)),   # anchor row block
                pl.BlockSpec((tn, D), lambda ri, cj: (cj, 0)),   # candidate col block
                pl.BlockSpec((tm, 1), lambda ri, cj: (ri, 0)),   # labels, column form
                pl.BlockSpec((1, tn), lambda ri, cj: (0, cj)),   # labels, row form
            ],
            out_specs=pl.BlockSpec((tm, 1), lambda ri, cj: (ri, 0)),
            scratch_shapes=[pltpu.VMEM((tm, 1), jnp.float32),    # running max pos d^2
                            pltpu.VMEM((tm, 1), jnp.float32)],   # running min neg d^2
        ),
        compiler_params=pltpu.CompilerParams(
            dimension_semantics=("parallel", "arbitrary")),
    )(x, x, lab_col, lab_row)

    # Drop padded rows; mean over the true batch.
    return jnp.sum(per_row[:N, 0]) / jnp.float32(N)


def _reference(embeddings, labels, margin, normalize_feature):
    """Pure-JAX mirror of the PyTorch module, for a sanity check."""
    x = embeddings.astype(jnp.float32)
    if normalize_feature:
        n = jnp.sqrt(jnp.sum(x * x, axis=1, keepdims=True))
        x = x / jnp.maximum(n, 1e-12)
    xx = jnp.sum(x * x, axis=1, keepdims=True)
    gram = jnp.matmul(x, x.T, precision=lax.Precision.HIGHEST)
    dist2 = xx + xx.T - 2.0 * gram
    dist = jnp.sqrt(jnp.maximum(dist2, 1e-12))
    N = x.shape[0]
    lab = labels.astype(jnp.int32)
    is_pos = lab[:, None] == lab[None, :]
    is_neg = ~is_pos
    eye = jnp.eye(N, dtype=bool)
    pos_masked = jnp.where(is_pos & ~eye, dist, -jnp.inf)
    dist_ap = jnp.where(jnp.sum(is_pos, axis=1) > 1, jnp.max(pos_masked, axis=1), 0.0)
    neg_masked = jnp.where(is_neg, dist, jnp.inf)
    dist_an = jnp.where(jnp.any(is_neg, axis=1), jnp.min(neg_masked, axis=1), jnp.inf)
    loss = jnp.maximum(dist_ap - dist_an + margin, 0.0)
    return jnp.mean(loss)


if __name__ == "__main__":
    key = jax.random.PRNGKey(0)
    k1, k2, k3 = jax.random.split(key, 3)

    # Small case matching the module's (batch, feat_dim) embedding input.
    N1, D1 = 8, 32
    emb1 = jax.random.normal(k1, (N1, D1), dtype=jnp.float32)
    lab1 = jnp.array([0, 0, 1, 1, 2, 2, 3, 3], dtype=jnp.int32)
    out1 = jax.block_until_ready(hard_triplet_loss(emb1, lab1, margin=0.3,
                                                   normalize_feature=True))
    ref1 = _reference(emb1, lab1, 0.3, True)
    assert jnp.isfinite(out1), out1
    assert jnp.allclose(out1, ref1, rtol=5e-4, atol=5e-4), (out1, ref1)

    # Larger case exercising the multi-block grid, accumulators and batch padding.
    N2, D2 = 200, 64
    emb2 = jax.random.normal(k2, (N2, D2), dtype=jnp.float32)
    lab2 = jax.random.randint(k3, (N2,), 0, 10, dtype=jnp.int32)
    out2 = jax.block_until_ready(hard_triplet_loss(emb2, lab2, margin=0.3,
                                                   normalize_feature=True))
    ref2 = _reference(emb2, lab2, 0.3, True)
    assert jnp.allclose(out2, ref2, rtol=5e-4, atol=5e-4), (out2, ref2)

    # Non-normalized path.
    out3 = jax.block_until_ready(hard_triplet_loss(emb2, lab2, margin=0.5,
                                                   normalize_feature=False))
    ref3 = _reference(emb2, lab2, 0.5, False)
    assert jnp.allclose(out3, ref3, rtol=5e-4, atol=5e-4), (out3, ref3)

    print("KERNEL_OK")
</pallas_src>

<mosaic_0001>
module attributes {stable_mosaic.version = 11 : i64} {
  func.func @_hard_triplet_kernel(%arg0: i32, %arg1: i32, %arg2: memref<128x32xf32, #tpu.memory_space<vmem>>, %arg3: memref<128x32xf32, #tpu.memory_space<vmem>>, %arg4: memref<128x1xi32, #tpu.memory_space<vmem>>, %arg5: memref<1x128xi32, #tpu.memory_space<vmem>>, %arg6: memref<128x1xf32, #tpu.memory_space<vmem>>, %arg7: memref<128x1xf32, #tpu.memory_space<vmem>>, %arg8: memref<128x1xf32, #tpu.memory_space<vmem>>) attributes {dimension_semantics = [#tpu.dimension_semantics<parallel>, #tpu.dimension_semantics<arbitrary>], iteration_bounds = array<i64: 1, 1>, scalar_prefetch = 0 : i64, scratch_operands = 2 : i64, tpu.core_type = #tpu.core_type<tc>, window_params = [{transform_indices = @transform_0, window_bounds = array<i64: 128, 32>}, {transform_indices = @transform_1, window_bounds = array<i64: 128, 32>}, {transform_indices = @transform_2, window_bounds = array<i64: 128, 1>}, {transform_indices = @transform_3, window_bounds = array<i64: 1, 128>}, {transform_indices = @transform_4, window_bounds = array<i64: 128, 1>}]} {
    %c0_i32 = arith.constant 0 : i32
    %0 = arith.cmpi eq, %arg1, %c0_i32 : i32
    %1 = arith.extui %0 : i1 to i32
    %c0_i32_0 = arith.constant 0 : i32
    %2 = arith.cmpi ne, %1, %c0_i32_0 : i32
    scf.if %2 {
      %cst_33 = arith.constant 0xFF800000 : f32
      %73 = vector.broadcast %cst_33 : f32 to vector<128x1xf32>
      %c0_34 = arith.constant 0 : index
      %c0_35 = arith.constant 0 : index
      %74 = vector.load %arg7[%c0_34, %c0_35] : memref<128x1xf32, #tpu.memory_space<vmem>>, vector<128x1xf32>
      tpu.vector_store %arg7[%c0_34, %c0_35], %73 {strides = array<i32>} : memref<128x1xf32, #tpu.memory_space<vmem>>, vector<128x1xf32>,
      %cst_36 = arith.constant 0x7F800000 : f32
      %75 = vector.broadcast %cst_36 : f32 to vector<128x1xf32>
      %c0_37 = arith.constant 0 : index
      %c0_38 = arith.constant 0 : index
      %76 = vector.load %arg8[%c0_37, %c0_38] : memref<128x1xf32, #tpu.memory_space<vmem>>, vector<128x1xf32>
      tpu.vector_store %arg8[%c0_37, %c0_38], %75 {strides = array<i32>} : memref<128x1xf32, #tpu.memory_space<vmem>>, vector<128x1xf32>,
    } else {
    }
    %c0 = arith.constant 0 : index
    %c0_1 = arith.constant 0 : index
    %3 = vector.load %arg2[%c0, %c0_1] : memref<128x32xf32, #tpu.memory_space<vmem>>, vector<128x32xf32>
    %c0_2 = arith.constant 0 : index
    %c0_3 = arith.constant 0 : index
    %4 = vector.load %arg3[%c0_2, %c0_3] : memref<128x32xf32, #tpu.memory_space<vmem>>, vector<128x32xf32>
    %5 = arith.mulf %3, %3 : vector<128x32xf32>
    %cst = arith.constant dense<0.000000e+00> : vector<128xf32>
    %6 = vector.multi_reduction <add>, %5, %cst [1] : vector<128x32xf32> to vector<128xf32>
    %7 = vector.shape_cast %6 : vector<128xf32> to vector<128x1xf32>
    %8 = math.sqrt %7 : vector<128x1xf32>
    %cst_4 = arith.constant 9.99999996E-13 : f32
    %9 = vector.broadcast %cst_4 : f32 to vector<128x1xf32>
    %10 = arith.maximumf %8, %9 : vector<128x1xf32>
    %cst_5 = arith.constant 1.000000e+00 : f32
    %11 = vector.broadcast %cst_5 : f32 to vector<128x1xf32>
    %12 = arith.divf %11, %10 : vector<128x1xf32>
    %13 = arith.mulf %4, %4 : vector<128x32xf32>
    %cst_6 = arith.constant dense<0.000000e+00> : vector<128xf32>
    %14 = vector.multi_reduction <add>, %13, %cst_6 [1] : vector<128x32xf32> to vector<128xf32>
    %15 = vector.shape_cast %14 : vector<128xf32> to vector<128x1xf32>
    %16 = math.sqrt %15 : vector<128x1xf32>
    %cst_7 = arith.constant 9.99999996E-13 : f32
    %17 = vector.broadcast %cst_7 : f32 to vector<128x1xf32>
    %18 = arith.maximumf %16, %17 : vector<128x1xf32>
    %cst_8 = arith.constant 1.000000e+00 : f32
    %19 = vector.broadcast %cst_8 : f32 to vector<128x1xf32>
    %20 = arith.divf %19, %18 : vector<128x1xf32>
    %21 = vector.broadcast %12 : vector<128x1xf32> to vector<128x32xf32>
    %22 = arith.mulf %3, %21 : vector<128x32xf32>
    %23 = vector.broadcast %20 : vector<128x1xf32> to vector<128x32xf32>
    %24 = arith.mulf %4, %23 : vector<128x32xf32>
    %cst_9 = arith.constant dense<0.000000e+00> : vector<128x128xf32>
    %25 = tpu.matmul %22, %24, %cst_9 {dimension_numbers = #tpu.dot_dimension_numbers<[1], [1], [0], [0], [0, 0, 1, 0], [], []>} : vector<128x32xf32>, vector<128x32xf32>, vector<128x128xf32> -> vector<128x128xf32>
    %cst_10 = arith.constant 2.000000e+00 : f32
    %26 = vector.broadcast %cst_10 : f32 to vector<128x128xf32>
    %27 = arith.mulf %26, %25 : vector<128x128xf32>
    %cst_11 = arith.constant 2.000000e+00 : f32
    %28 = vector.broadcast %cst_11 : f32 to vector<128x128xf32>
    %29 = arith.subf %28, %27 : vector<128x128xf32>
    %cst_12 = arith.constant 9.99999996E-13 : f32
    %30 = vector.broadcast %cst_12 : f32 to vector<128x128xf32>
    %31 = arith.maximumf %29, %30 : vector<128x128xf32>
    %c0_13 = arith.constant 0 : index
    %c0_14 = arith.constant 0 : index
    %32 = vector.load %arg4[%c0_13, %c0_14] : memref<128x1xi32, #tpu.memory_space<vmem>>, vector<128x1xi32>
    %c0_15 = arith.constant 0 : index
    %c0_16 = arith.constant 0 : index
    %33 = vector.load %arg5[%c0_15, %c0_16] : memref<1x128xi32, #tpu.memory_space<vmem>>, vector<1x128xi32>
    %34 = vector.broadcast %32 : vector<128x1xi32> to vector<128x128xi32>
    %35 = vector.broadcast %33 : vector<1x128xi32> to vector<128x128xi32>
    %36 = arith.cmpi eq, %34, %35 : vector<128x128xi32>
    %37 = tpu.iota {dimensions = array<i32: 0>} : vector<128x1xi32>
    %c128_i32 = arith.constant 128 : i32
    %38 = arith.muli %arg0, %c128_i32 : i32
    %39 = vector.broadcast %38 : i32 to vector<128x1xi32>
    %40 = arith.addi %37, %39 : vector<128x1xi32>
    %41 = tpu.iota {dimensions = array<i32: 1>} : vector<1x128xi32>
    %c128_i32_17 = arith.constant 128 : i32
    %42 = arith.muli %arg1, %c128_i32_17 : i32
    %43 = vector.broadcast %42 : i32 to vector<1x128xi32>
    %44 = arith.addi %41, %43 : vector<1x128xi32>
    %45 = vector.broadcast %40 : vector<128x1xi32> to vector<128x128xi32>
    %46 = vector.broadcast %44 : vector<1x128xi32> to vector<128x128xi32>
    %47 = arith.cmpi ne, %45, %46 : vector<128x128xi32>
    %48 = arith.andi %36, %47 : vector<128x128xi1>
    %cst_18 = arith.constant dense<true> : vector<128x128xi1>
    %49 = arith.xori %36, %cst_18 : vector<128x128xi1>
    %c8_i32 = arith.constant 8 : i32
    %50 = vector.broadcast %c8_i32 : i32 to vector<1x128xi32>
    %51 = arith.cmpi slt, %44, %50 : vector<1x128xi32>
    %52 = vector.broadcast %51 : vector<1x128xi1> to vector<128x128xi1>
    %53 = arith.andi %48, %52 : vector<128x128xi1>
    %54 = vector.broadcast %51 : vector<1x128xi1> to vector<128x128xi1>
    %55 = arith.andi %49, %54 : vector<128x128xi1>
    %c0_19 = arith.constant 0 : index
    %c0_20 = arith.constant 0 : index
    %56 = vector.load %arg7[%c0_19, %c0_20] : memref<128x1xf32, #tpu.memory_space<vmem>>, vector<128x1xf32>
    %cst_21 = arith.constant 0xFF800000 : f32
    %57 = vector.broadcast %cst_21 : f32 to vector<128x128xf32>
    %58 = arith.select %53, %31, %57 : vector<128x128xi1>, vector<128x128xf32>
    %cst_22 = arith.constant dense<0xFF800000> : vector<128xf32>
    %59 = vector.multi_reduction <maximumf>, %58, %cst_22 [1] : vector<128x128xf32> to vector<128xf32>
    %60 = vector.shape_cast %59 : vector<128xf32> to vector<128x1xf32>
    %61 = arith.maximumf %56, %60 : vector<128x1xf32>
    %c0_23 = arith.constant 0 : index
    %c0_24 = arith.constant 0 : index
    %62 = vector.load %arg7[%c0_23, %c0_24] : memref<128x1xf32, #tpu.memory_space<vmem>>, vector<128x1xf32>
    tpu.vector_store %arg7[%c0_23, %c0_24], %61 {strides = array<i32>} : memref<128x1xf32, #tpu.memory_space<vmem>>, vector<128x1xf32>,
    %c0_25 = arith.constant 0 : index
    %c0_26 = arith.constant 0 : index
    %63 = vector.load %arg8[%c0_25, %c0_26] : memref<128x1xf32, #tpu.memory_space<vmem>>, vector<128x1xf32>
    %cst_27 = arith.constant 0x7F800000 : f32
    %64 = vector.broadcast %cst_27 : f32 to vector<128x128xf32>
    %65 = arith.select %55, %31, %64 : vector<128x128xi1>, vector<128x128xf32>
    %cst_28 = arith.constant dense<0x7F800000> : vector<128xf32>
    %66 = vector.multi_reduction <minimumf>, %65, %cst_28 [1] : vector<128x128xf32> to vector<128xf32>
    %67 = vector.shape_cast %66 : vector<128xf32> to vector<128x1xf32>
    %68 = arith.minimumf %63, %67 : vector<128x1xf32>
    %c0_29 = arith.constant 0 : index
    %c0_30 = arith.constant 0 : index
    %69 = vector.load %arg8[%c0_29, %c0_30] : memref<128x1xf32, #tpu.memory_space<vmem>>, vector<128x1xf32>
    tpu.vector_store %arg8[%c0_29, %c0_30], %68 {strides = array<i32>} : memref<128x1xf32, #tpu.memory_space<vmem>>, vector<128x1xf32>,
    %c0_i32_31 = arith.constant 0 : i32
    %70 = arith.cmpi eq, %arg1, %c0_i32_31 : i32
    %71 = arith.extui %70 : i1 to i32
    %c0_i32_32 = arith.constant 0 : i32
    %72 = arith.cmpi ne, %71, %c0_i32_32 : i32
    scf.if %72 {
      %c0_33 = arith.constant 0 : index
      %c0_34 = arith.constant 0 : index
      %73 = vector.load %arg7[%c0_33, %c0_34] : memref<128x1xf32, #tpu.memory_space<vmem>>, vector<128x1xf32>
      %c0_35 = arith.constant 0 : index
      %c0_36 = arith.constant 0 : index
      %74 = vector.load %arg8[%c0_35, %c0_36] : memref<128x1xf32, #tpu.memory_space<vmem>>, vector<128x1xf32>
      %cst_37 = arith.constant 0xFF800000 : f32
      %75 = vector.broadcast %cst_37 : f32 to vector<128x1xf32>
      %76 = arith.cmpf ogt, %73, %75 : vector<128x1xf32>
      %cst_38 = arith.constant 9.99999996E-13 : f32
      %77 = vector.broadcast %cst_38 : f32 to vector<128x1xf32>
      %78 = arith.maximumf %73, %77 : vector<128x1xf32>
      %79 = math.sqrt %78 : vector<128x1xf32>
      %cst_39 = arith.constant 0.000000e+00 : f32
      %80 = vector.broadcast %cst_39 : f32 to vector<128x1xf32>
      %81 = arith.select %76, %79, %80 : vector<128x1xi1>, vector<128x1xf32>
      %82 = math.sqrt %74 : vector<128x1xf32>
      %83 = arith.subf %81, %82 : vector<128x1xf32>
      %cst_40 = arith.constant 3.000000e-01 : f32
      %84 = vector.broadcast %cst_40 : f32 to vector<128x1xf32>
      %85 = arith.addf %83, %84 : vector<128x1xf32>
      %cst_41 = arith.constant 0.000000e+00 : f32
      %86 = vector.broadcast %cst_41 : f32 to vector<128x1xf32>
      %87 = arith.maximumf %85, %86 : vector<128x1xf32>
      %c0_42 = arith.constant 0 : index
      %c0_43 = arith.constant 0 : index
      %88 = vector.load %arg6[%c0_42, %c0_43] : memref<128x1xf32, #tpu.memory_space<vmem>>, vector<128x1xf32>
      tpu.vector_store %arg6[%c0_42, %c0_43], %87 {strides = array<i32>} : memref<128x1xf32, #tpu.memory_space<vmem>>, vector<128x1xf32>,
    } else {
    }
    return
  }
  func.func @transform_0(%arg0: i32, %arg1: i32) -> (i32, i32) {
    %c0_i32 = arith.constant 0 : i32
    %c0_i32_0 = arith.constant 0 : i32
    return %arg0, %c0_i32 : i32, i32
  }
  func.func @transform_1(%arg0: i32, %arg1: i32) -> (i32, i32) {
    %c0_i32 = arith.constant 0 : i32
    %c0_i32_0 = arith.constant 0 : i32
    return %arg1, %c0_i32 : i32, i32
  }
  func.func @transform_2(%arg0: i32, %arg1: i32) -> (i32, i32) {
    %c0_i32 = arith.constant 0 : i32
    %c0_i32_0 = arith.constant 0 : i32
    return %arg0, %c0_i32 : i32, i32
  }
  func.func @transform_3(%arg0: i32, %arg1: i32) -> (i32, i32) {
    %c0_i32 = arith.constant 0 : i32
    %c0_i32_0 = arith.constant 0 : i32
    return %c0_i32, %arg1 : i32, i32
  }
  func.func @transform_4(%arg0: i32, %arg1: i32) -> (i32, i32) {
    %c0_i32 = arith.constant 0 : i32
    %c0_i32_0 = arith.constant 0 : i32
    return %arg0, %c0_i32 : i32, i32
  }
}

</mosaic_0001>

<llo_original>
// kernel: tpu_custom_call.1
$region0: #{tpu_custom_call.1}
  #allocation0 [shape = 'u32[]', space=smem, size = 0x4, offset = 0x4, fixed_abs, tag = 'smem constant byte address 0x4 - core index']
  #allocation1 [shape = 'u32[144,128]{1,0:T(1,128)}', space=vmem, size = 0x12000, scoped, tag = 'internal scratch']
  #allocation2 [shape = 'f32[128,1]{1,0:T(8,128)}', space=vmem, size = 0x10000, scoped, tag = 'scratch operand']
  #allocation3 [shape = 'f32[128,1]{1,0:T(8,128)}', space=vmem, size = 0x10000, scoped, tag = 'scratch operand']
  %s0 = inlined_call_operand.vmem [shape: f32[128,32], index: 0, kind: input, shape index: {}]
  %s1 = inlined_call_operand.vmem [shape: f32[128,32], index: 1, kind: input, shape index: {}]
  %s2 = inlined_call_operand.vmem [shape: s32[128,1], index: 2, kind: input, shape index: {}]
  %s3 = inlined_call_operand.vmem [shape: s32[1,128], index: 3, kind: input, shape index: {}]
  %s4 = inlined_call_operand.vmem [shape: f32[128,1], index: 4, kind: output, shape index: {}]
  %s5 = sld [smem:[#allocation0]]
  $region34: #{tpu_custom_call.1} parent=0
    _
  %s7 = ssub.s32 1, %s5
  %s8 = scalar_select 0, %s7, %s5
  // Predicated region
  $region2: #{tpu_custom_call.1} parent=0 // pred_check
    _
  $region3: #{tpu_custom_call.1} parent=0 // pred_check_branch
    %10 = sbr.rel (0) target = $region5
  $region4: #{tpu_custom_call.1} parent=0 // pred_region
    _
  $region5: #{tpu_custom_call.1} parent=0 // pred_fallthru
    _
  // Predicated region
  $region6: #{tpu_custom_call.1} parent=0 // pred_check
    _
  $region7: #{tpu_custom_call.1} parent=0 // pred_check_branch
    %12 = sbr.rel (0) target = $region9
  $region8: #{tpu_custom_call.1} parent=0 // pred_region
    _
  $region9: #{tpu_custom_call.1} parent=0 // pred_fallthru
    _
  // Predicated region
  $region10: #{tpu_custom_call.1} parent=0 // pred_check
    _
  $region11: #{tpu_custom_call.1} parent=0 // pred_check_branch
    %14 = sbr.rel (0) target = $region13
  $region12: #{tpu_custom_call.1} parent=0 // pred_region
    _
  $region13: #{tpu_custom_call.1} parent=0 // pred_fallthru
    _
  // Predicated region
  $region14: #{tpu_custom_call.1} parent=0 // pred_check
    _
  $region15: #{tpu_custom_call.1} parent=0 // pred_check_branch
    %16 = sbr.rel (0) target = $region17
  $region16: #{tpu_custom_call.1} parent=0 // pred_region
    _
  $region17: #{tpu_custom_call.1} parent=0 // pred_fallthru
    _
  %p17 = scmp.eq.s32.totalorder 0, 0
  // Predicated region
  $region18: #{tpu_custom_call.1} parent=0 // pred_check
    %p18 = pneg %p17
  $region19: #{tpu_custom_call.1} parent=0 // pred_check_branch
    %20 = sbr.rel (%p18) target = $region21
  $region20: #{tpu_custom_call.1} parent=0 // pred_region
    %vm21 = vcmask 7168
    %22 = vst.msk [vmem:[#allocation2] sm:$0xff] %vm21, -inf
    %23 = vst.msk [vmem:[#allocation2 + $0x8] sm:$0xff] %vm21, -inf
    %24 = vst.msk [vmem:[#allocation2 + $0x10] sm:$0xff] %vm21, -inf
    %25 = vst.msk [vmem:[#allocation2 + $0x18] sm:$0xff] %vm21, -inf
    %26 = vst.msk [vmem:[#allocation2 + $0x20] sm:$0xff] %vm21, -inf
    %27 = vst.msk [vmem:[#allocation2 + $0x28] sm:$0xff] %vm21, -inf
    %28 = vst.msk [vmem:[#allocation2 + $0x30] sm:$0xff] %vm21, -inf
    %29 = vst.msk [vmem:[#allocation2 + $0x38] sm:$0xff] %vm21, -inf
    %30 = vst.msk [vmem:[#allocation2 + $0x40] sm:$0xff] %vm21, -inf
    %31 = vst.msk [vmem:[#allocation2 + $0x48] sm:$0xff] %vm21, -inf
    %32 = vst.msk [vmem:[#allocation2 + $0x50] sm:$0xff] %vm21, -inf
    %33 = vst.msk [vmem:[#allocation2 + $0x58] sm:$0xff] %vm21, -inf
    %34 = vst.msk [vmem:[#allocation2 + $0x60] sm:$0xff] %vm21, -inf
    %35 = vst.msk [vmem:[#allocation2 + $0x68] sm:$0xff] %vm21, -inf
    %36 = vst.msk [vmem:[#allocation2 + $0x70] sm:$0xff] %vm21, -inf
    %37 = vst.msk [vmem:[#allocation2 + $0x78] sm:$0xff] %vm21, -inf
    %38 = vst.msk [vmem:[#allocation3] sm:$0xff] %vm21, inf
    %39 = vst.msk [vmem:[#allocation3 + $0x8] sm:$0xff] %vm21, inf
    %40 = vst.msk [vmem:[#allocation3 + $0x10] sm:$0xff] %vm21, inf
    %41 = vst.msk [vmem:[#allocation3 + $0x18] sm:$0xff] %vm21, inf
    %42 = vst.msk [vmem:[#allocation3 + $0x20] sm:$0xff] %vm21, inf
    %43 = vst.msk [vmem:[#allocation3 + $0x28] sm:$0xff] %vm21, inf
    %44 = vst.msk [vmem:[#allocation3 + $0x30] sm:$0xff] %vm21, inf
    %45 = vst.msk [vmem:[#allocation3 + $0x38] sm:$0xff] %vm21, inf
    %46 = vst.msk [vmem:[#allocation3 + $0x40] sm:$0xff] %vm21, inf
    %47 = vst.msk [vmem:[#allocation3 + $0x48] sm:$0xff] %vm21, inf
    %48 = vst.msk [vmem:[#allocation3 + $0x50] sm:$0xff] %vm21, inf
    %49 = vst.msk [vmem:[#allocation3 + $0x58] sm:$0xff] %vm21, inf
    %50 = vst.msk [vmem:[#allocation3 + $0x60] sm:$0xff] %vm21, inf
    %51 = vst.msk [vmem:[#allocation3 + $0x68] sm:$0xff] %vm21, inf
    %52 = vst.msk [vmem:[#allocation3 + $0x70] sm:$0xff] %vm21, inf
    %53 = vst.msk [vmem:[#allocation3 + $0x78] sm:$0xff] %vm21, inf
  $region21: #{tpu_custom_call.1} parent=0 // pred_fallthru
    _
  %v54 = vld [vmem:[%s0] sm:$0xff]
  %v55 = vld [vmem:[%s0 + $0x8] sm:$0xff]
  %v56 = vld [vmem:[%s0 + $0x10] sm:$0xff]
  %v57 = vld [vmem:[%s0 + $0x18] sm:$0xff]
  %v58 = vld [vmem:[%s0 + $0x20] sm:$0xff]
  %v59 = vld [vmem:[%s0 + $0x28] sm:$0xff]
  %v60 = vld [vmem:[%s0 + $0x30] sm:$0xff]
  %v61 = vld [vmem:[%s0 + $0x38] sm:$0xff]
  %v62 = vld [vmem:[%s0 + $0x40] sm:$0xff]
  %v63 = vld [vmem:[%s0 + $0x48] sm:$0xff]
  %v64 = vld [vmem:[%s0 + $0x50] sm:$0xff]
  %v65 = vld [vmem:[%s0 + $0x58] sm:$0xff]
  %v66 = vld [vmem:[%s0 + $0x60] sm:$0xff]
  %v67 = vld [vmem:[%s0 + $0x68] sm:$0xff]
  %v68 = vld [vmem:[%s0 + $0x70] sm:$0xff]
  %v69 = vld [vmem:[%s0 + $0x78] sm:$0xff]
  %v70 = vld [vmem:[%s1] sm:$0xff]
  %v71 = vld [vmem:[%s1 + $0x8] sm:$0xff]
  %v72 = vld [vmem:[%s1 + $0x10] sm:$0xff]
  %v73 = vld [vmem:[%s1 + $0x18] sm:$0xff]
  %v74 = vld [vmem:[%s1 + $0x20] sm:$0xff]
  %v75 = vld [vmem:[%s1 + $0x28] sm:$0xff]
  %v76 = vld [vmem:[%s1 + $0x30] sm:$0xff]
  %v77 = vld [vmem:[%s1 + $0x38] sm:$0xff]
  %v78 = vld [vmem:[%s1 + $0x40] sm:$0xff]
  %v79 = vld [vmem:[%s1 + $0x48] sm:$0xff]
  %v80 = vld [vmem:[%s1 + $0x50] sm:$0xff]
  %v81 = vld [vmem:[%s1 + $0x58] sm:$0xff]
  %v82 = vld [vmem:[%s1 + $0x60] sm:$0xff]
  %v83 = vld [vmem:[%s1 + $0x68] sm:$0xff]
  %v84 = vld [vmem:[%s1 + $0x70] sm:$0xff]
  %v85 = vld [vmem:[%s1 + $0x78] sm:$0xff]
  %v86 = vmul.f32 %v54, %v54
  %v87 = vmul.f32 %v55, %v55
  %v88 = vmul.f32 %v56, %v56
  %v89 = vmul.f32 %v57, %v57
  %v90 = vmul.f32 %v58, %v58
  %v91 = vmul.f32 %v59, %v59
  %v92 = vmul.f32 %v60, %v60
  %v93 = vmul.f32 %v61, %v61
  %v94 = vmul.f32 %v62, %v62
  %v95 = vmul.f32 %v63, %v63
  %v96 = vmul.f32 %v64, %v64
  %v97 = vmul.f32 %v65, %v65
  %v98 = vmul.f32 %v66, %v66
  %v99 = vmul.f32 %v67, %v67
  %v100 = vmul.f32 %v68, %v68
  %v101 = vmul.f32 %v69, %v69
  %vm102 = vcmask 261120
  %v103 = vsel %vm102, %v86, 0.0
  %104 = vadd.xlane.f32.xlu0 %v103
  %v105 = vpop.xlane.xlu0 %104
  %v106 = vsel %vm102, %v87, 0.0
  %107 = vadd.xlane.f32.xlu0 %v106
  %v108 = vpop.xlane.xlu0 %107
  %v109 = vsel %vm102, %v88, 0.0
  %110 = vadd.xlane.f32.xlu0 %v109
  %v111 = vpop.xlane.xlu0 %110
  %v112 = vsel %vm102, %v89, 0.0
  %113 = vadd.xlane.f32.xlu0 %v112
  %v114 = vpop.xlane.xlu0 %113
  %v115 = vsel %vm102, %v90, 0.0
  %116 = vadd.xlane.f32.xlu0 %v115
  %v117 = vpop.xlane.xlu0 %116
  %v118 = vsel %vm102, %v91, 0.0
  %119 = vadd.xlane.f32.xlu0 %v118
  %v120 = vpop.xlane.xlu0 %119
  %v121 = vsel %vm102, %v92, 0.0
  %122 = vadd.xlane.f32.xlu0 %v121
  %v123 = vpop.xlane.xlu0 %122
  %v124 = vsel %vm102, %v93, 0.0
  %125 = vadd.xlane.f32.xlu0 %v124
  %v126 = vpop.xlane.xlu0 %125
  %v127 = vsel %vm102, %v94, 0.0
  %128 = vadd.xlane.f32.xlu0 %v127
  %v129 = vpop.xlane.xlu0 %128
  %v130 = vsel %vm102, %v95, 0.0
  %131 = vadd.xlane.f32.xlu0 %v130
  %v132 = vpop.xlane.xlu0 %131
  %v133 = vsel %vm102, %v96, 0.0
  %134 = vadd.xlane.f32.xlu0 %v133
  %v135 = vpop.xlane.xlu0 %134
  %v136 = vsel %vm102, %v97, 0.0
  %137 = vadd.xlane.f32.xlu0 %v136
  %v138 = vpop.xlane.xlu0 %137
  %v139 = vsel %vm102, %v98, 0.0
  %140 = vadd.xlane.f32.xlu0 %v139
  %v141 = vpop.xlane.xlu0 %140
  %v142 = vsel %vm102, %v99, 0.0
  %143 = vadd.xlane.f32.xlu0 %v142
  %v144 = vpop.xlane.xlu0 %143
  %v145 = vsel %vm102, %v100, 0.0
  %146 = vadd.xlane.f32.xlu0 %v145
  %v147 = vpop.xlane.xlu0 %146
  %v148 = vsel %vm102, %v101, 0.0
  %149 = vadd.xlane.f32.xlu0 %v148
  %v150 = vpop.xlane.xlu0 %149
  %v151 = vrsqrt.pop %v105
  %v152 = vmul.f32 %v105, %v151
  %vm153 = vcmp.eq.f32.partialorder %v105, inf
  %v154 = vsel %vm153, %v105, %v152
  %vm155 = vcmp.eq.f32.partialorder %v105, 0.0
  %v156 = vand.u32 %v105, 2147483648
  %v157 = vsel %vm155, %v156, %v154
  %v158 = vrsqrt.pop %v108
  %v159 = vmul.f32 %v108, %v158
  %vm160 = vcmp.eq.f32.partialorder %v108, inf
  %v161 = vsel %vm160, %v108, %v159
  %vm162 = vcmp.eq.f32.partialorder %v108, 0.0
  %v163 = vand.u32 %v108, 2147483648
  %v164 = vsel %vm162, %v163, %v161
  %v165 = vrsqrt.pop %v111
  %v166 = vmul.f32 %v111, %v165
  %vm167 = vcmp.eq.f32.partialorder %v111, inf
  %v168 = vsel %vm167, %v111, %v166
  %vm169 = vcmp.eq.f32.partialorder %v111, 0.0
  %v170 = vand.u32 %v111, 2147483648
  %v171 = vsel %vm169, %v170, %v168
  %v172 = vrsqrt.pop %v114
  %v173 = vmul.f32 %v114, %v172
  %vm174 = vcmp.eq.f32.partialorder %v114, inf
  %v175 = vsel %vm174, %v114, %v173
  %vm176 = vcmp.eq.f32.partialorder %v114, 0.0
  %v177 = vand.u32 %v114, 2147483648
  %v178 = vsel %vm176, %v177, %v175
  %v179 = vrsqrt.pop %v117
  %v180 = vmul.f32 %v117, %v179
  %vm181 = vcmp.eq.f32.partialorder %v117, inf
  %v182 = vsel %vm181, %v117, %v180
  %vm183 = vcmp.eq.f32.partialorder %v117, 0.0
  %v184 = vand.u32 %v117, 2147483648
  %v185 = vsel %vm183, %v184, %v182
  %v186 = vrsqrt.pop %v120
  %v187 = vmul.f32 %v120, %v186
  %vm188 = vcmp.eq.f32.partialorder %v120, inf
  %v189 = vsel %vm188, %v120, %v187
  %vm190 = vcmp.eq.f32.partialorder %v120, 0.0
  %v191 = vand.u32 %v120, 2147483648
  %v192 = vsel %vm190, %v191, %v189
  %v193 = vrsqrt.pop %v123
  %v194 = vmul.f32 %v123, %v193
  %vm195 = vcmp.eq.f32.partialorder %v123, inf
  %v196 = vsel %vm195, %v123, %v194
  %vm197 = vcmp.eq.f32.partialorder %v123, 0.0
  %v198 = vand.u32 %v123, 2147483648
  %v199 = vsel %vm197, %v198, %v196
  %v200 = vrsqrt.pop %v126
  %v201 = vmul.f32 %v126, %v200
  %vm202 = vcmp.eq.f32.partialorder %v126, inf
  %v203 = vsel %vm202, %v126, %v201
  %vm204 = vcmp.eq.f32.partialorder %v126, 0.0
  %v205 = vand.u32 %v126, 2147483648
  %v206 = vsel %vm204, %v205, %v203
  %v207 = vrsqrt.pop %v129
  %v208 = vmul.f32 %v129, %v207
  %vm209 = vcmp.eq.f32.partialorder %v129, inf
  %v210 = vsel %vm209, %v129, %v208
  %vm211 = vcmp.eq.f32.partialorder %v129, 0.0
  %v212 = vand.u32 %v129, 2147483648
  %v213 = vsel %vm211, %v212, %v210
  %v214 = vrsqrt.pop %v132
  %v215 = vmul.f32 %v132, %v214
  %vm216 = vcmp.eq.f32.partialorder %v132, inf
  %v217 = vsel %vm216, %v132, %v215
  %vm218 = vcmp.eq.f32.partialorder %v132, 0.0
  %v219 = vand.u32 %v132, 2147483648
  %v220 = vsel %vm218, %v219, %v217
  %v221 = vrsqrt.pop %v135
  %v222 = vmul.f32 %v135, %v221
  %vm223 = vcmp.eq.f32.partialorder %v135, inf
  %v224 = vsel %vm223, %v135, %v222
  %vm225 = vcmp.eq.f32.partialorder %v135, 0.0
  %v226 = vand.u32 %v135, 2147483648
  %v227 = vsel %vm225, %v226, %v224
  %v228 = vrsqrt.pop %v138
  %v229 = vmul.f32 %v138, %v228
  %vm230 = vcmp.eq.f32.partialorder %v138, inf
  %v231 = vsel %vm230, %v138, %v229
  %vm232 = vcmp.eq.f32.partialorder %v138, 0.0
  %v233 = vand.u32 %v138, 2147483648
  %v234 = vsel %vm232, %v233, %v231
  %v235 = vrsqrt.pop %v141
  %v236 = vmul.f32 %v141, %v235
  %vm237 = vcmp.eq.f32.partialorder %v141, inf
  %v238 = vsel %vm237, %v141, %v236
  %vm239 = vcmp.eq.f32.partialorder %v141, 0.0
  %v240 = vand.u32 %v141, 2147483648
  %v241 = vsel %vm239, %v240, %v238
  %v242 = vrsqrt.pop %v144
  %v243 = vmul.f32 %v144, %v242
  %vm244 = vcmp.eq.f32.partialorder %v144, inf
  %v245 = vsel %vm244, %v144, %v243
  %vm246 = vcmp.eq.f32.partialorder %v144, 0.0
  %v247 = vand.u32 %v144, 2147483648
  %v248 = vsel %vm246, %v247, %v245
  %v249 = vrsqrt.pop %v147
  %v250 = vmul.f32 %v147, %v249
  %vm251 = vcmp.eq.f32.partialorder %v147, inf
  %v252 = vsel %vm251, %v147, %v250
  %vm253 = vcmp.eq.f32.partialorder %v147, 0.0
  %v254 = vand.u32 %v147, 2147483648
  %v255 = vsel %vm253, %v254, %v252
  %v256 = vrsqrt.pop %v150
  %v257 = vmul.f32 %v150, %v256
  %vm258 = vcmp.eq.f32.partialorder %v150, inf
  %v259 = vsel %vm258, %v150, %v257
  %vm260 = vcmp.eq.f32.partialorder %v150, 0.0
  %v261 = vand.u32 %v150, 2147483648
  %v262 = vsel %vm260, %v261, %v259
  %v263 = vmax.f32 %v157, 1e-12
  %v264 = vmax.f32 %v164, 1e-12
  %v265 = vmax.f32 %v171, 1e-12
  %v266 = vmax.f32 %v178, 1e-12
  %v267 = vmax.f32 %v185, 1e-12
  %v268 = vmax.f32 %v192, 1e-12
  %v269 = vmax.f32 %v199, 1e-12
  %v270 = vmax.f32 %v206, 1e-12
  %v271 = vmax.f32 %v213, 1e-12
  %v272 = vmax.f32 %v220, 1e-12
  %v273 = vmax.f32 %v227, 1e-12
  %v274 = vmax.f32 %v234, 1e-12
  %v275 = vmax.f32 %v241, 1e-12
  %v276 = vmax.f32 %v248, 1e-12
  %v277 = vmax.f32 %v255, 1e-12
  %v278 = vmax.f32 %v262, 1e-12
  %v279 = vrcp.pop %v263
  %v280 = vmul.f32 1.0, %v279
  %v281 = vrcp.pop %v264
  %v282 = vmul.f32 1.0, %v281
  %v283 = vrcp.pop %v265
  %v284 = vmul.f32 1.0, %v283
  %v285 = vrcp.pop %v266
  %v286 = vmul.f32 1.0, %v285
  %v287 = vrcp.pop %v267
  %v288 = vmul.f32 1.0, %v287
  %v289 = vrcp.pop %v268
  %v290 = vmul.f32 1.0, %v289
  %v291 = vrcp.pop %v269
  %v292 = vmul.f32 1.0, %v291
  %v293 = vrcp.pop %v270
  %v294 = vmul.f32 1.0, %v293
  %v295 = vrcp.pop %v271
  %v296 = vmul.f32 1.0, %v295
  %v297 = vrcp.pop %v272
  %v298 = vmul.f32 1.0, %v297
  %v299 = vrcp.pop %v273
  %v300 = vmul.f32 1.0, %v299
  %v301 = vrcp.pop %v274
  %v302 = vmul.f32 1.0, %v301
  %v303 = vrcp.pop %v275
  %v304 = vmul.f32 1.0, %v303
  %v305 = vrcp.pop %v276
  %v306 = vmul.f32 1.0, %v305
  %v307 = vrcp.pop %v277
  %v308 = vmul.f32 1.0, %v307
  %v309 = vrcp.pop %v278
  %v310 = vmul.f32 1.0, %v309
  %v311 = vmul.f32 %v70, %v70
  %v312 = vmul.f32 %v71, %v71
  %v313 = vmul.f32 %v72, %v72
  %v314 = vmul.f32 %v73, %v73
  %v315 = vmul.f32 %v74, %v74
  %v316 = vmul.f32 %v75, %v75
  %v317 = vmul.f32 %v76, %v76
  %v318 = vmul.f32 %v77, %v77
  %v319 = vmul.f32 %v78, %v78
  %v320 = vmul.f32 %v79, %v79
  %v321 = vmul.f32 %v80, %v80
  %v322 = vmul.f32 %v81, %v81
  %v323 = vmul.f32 %v82, %v82
  %v324 = vmul.f32 %v83, %v83
  %v325 = vmul.f32 %v84, %v84
  %v326 = vmul.f32 %v85, %v85
  %v327 = vsel %vm102, %v311, 0.0
  %328 = vadd.xlane.f32.xlu0 %v327
  %v329 = vpop.xlane.xlu0 %328
  %v330 = vsel %vm102, %v312, 0.0
  %331 = vadd.xlane.f32.xlu0 %v330
  %v332 = vpop.xlane.xlu0 %331
  %v333 = vsel %vm102, %v313, 0.0
  %334 = vadd.xlane.f32.xlu0 %v333
  %v335 = vpop.xlane.xlu0 %334
  %v336 = vsel %vm102, %v314, 0.0
  %337 = vadd.xlane.f32.xlu0 %v336
  %v338 = vpop.xlane.xlu0 %337
  %v339 = vsel %vm102, %v315, 0.0
  %340 = vadd.xlane.f32.xlu0 %v339
  %v341 = vpop.xlane.xlu0 %340
  %v342 = vsel %vm102, %v316, 0.0
  %343 = vadd.xlane.f32.xlu0 %v342
  %v344 = vpop.xlane.xlu0 %343
  %v345 = vsel %vm102, %v317, 0.0
  %346 = vadd.xlane.f32.xlu0 %v345
  %v347 = vpop.xlane.xlu0 %346
  %v348 = vsel %vm102, %v318, 0.0
  %349 = vadd.xlane.f32.xlu0 %v348
  %v350 = vpop.xlane.xlu0 %349
  %v351 = vsel %vm102, %v319, 0.0
  %352 = vadd.xlane.f32.xlu0 %v351
  %v353 = vpop.xlane.xlu0 %352
  %v354 = vsel %vm102, %v320, 0.0
  %355 = vadd.xlane.f32.xlu0 %v354
  %v356 = vpop.xlane.xlu0 %355
  %v357 = vsel %vm102, %v321, 0.0
  %358 = vadd.xlane.f32.xlu0 %v357
  %v359 = vpop.xlane.xlu0 %358
  %v360 = vsel %vm102, %v322, 0.0
  %361 = vadd.xlane.f32.xlu0 %v360
  %v362 = vpop.xlane.xlu0 %361
  %v363 = vsel %vm102, %v323, 0.0
  %364 = vadd.xlane.f32.xlu0 %v363
  %v365 = vpop.xlane.xlu0 %364
  %v366 = vsel %vm102, %v324, 0.0
  %367 = vadd.xlane.f32.xlu0 %v366
  %v368 = vpop.xlane.xlu0 %367
  %v369 = vsel %vm102, %v325, 0.0
  %370 = vadd.xlane.f32.xlu0 %v369
  %v371 = vpop.xlane.xlu0 %370
  %v372 = vsel %vm102, %v326, 0.0
  %373 = vadd.xlane.f32.xlu0 %v372
  %v374 = vpop.xlane.xlu0 %373
  %v375 = vrsqrt.pop %v329
  %v376 = vmul.f32 %v329, %v375
  %vm377 = vcmp.eq.f32.partialorder %v329, inf
  %v378 = vsel %vm377, %v329, %v376
  %vm379 = vcmp.eq.f32.partialorder %v329, 0.0
  %v380 = vand.u32 %v329, 2147483648
  %v381 = vsel %vm379, %v380, %v378
  %v382 = vrsqrt.pop %v332
  %v383 = vmul.f32 %v332, %v382
  %vm384 = vcmp.eq.f32.partialorder %v332, inf
  %v385 = vsel %vm384, %v332, %v383
  %vm386 = vcmp.eq.f32.partialorder %v332, 0.0
  %v387 = vand.u32 %v332, 2147483648
  %v388 = vsel %vm386, %v387, %v385
  %v389 = vrsqrt.pop %v335
  %v390 = vmul.f32 %v335, %v389
  %vm391 = vcmp.eq.f32.partialorder %v335, inf
  %v392 = vsel %vm391, %v335, %v390
  %vm393 = vcmp.eq.f32.partialorder %v335, 0.0
  %v394 = vand.u32 %v335, 2147483648
  %v395 = vsel %vm393, %v394, %v392
  %v396 = vrsqrt.pop %v338
  %v397 = vmul.f32 %v338, %v396
  %vm398 = vcmp.eq.f32.partialorder %v338, inf
  %v399 = vsel %vm398, %v338, %v397
  %vm400 = vcmp.eq.f32.partialorder %v338, 0.0
  %v401 = vand.u32 %v338, 2147483648
  %v402 = vsel %vm400, %v401, %v399
  %v403 = vrsqrt.pop %v341
  %v404 = vmul.f32 %v341, %v403
  %vm405 = vcmp.eq.f32.partialorder %v341, inf
  %v406 = vsel %vm405, %v341, %v404
  %vm407 = vcmp.eq.f32.partialorder %v341, 0.0
  %v408 = vand.u32 %v341, 2147483648
  %v409 = vsel %vm407, %v408, %v406
  %v410 = vrsqrt.pop %v344
  %v411 = vmul.f32 %v344, %v410
  %vm412 = vcmp.eq.f32.partialorder %v344, inf
  %v413 = vsel %vm412, %v344, %v411
  %vm414 = vcmp.eq.f32.partialorder %v344, 0.0
  %v415 = vand.u32 %v344, 2147483648
  %v416 = vsel %vm414, %v415, %v413
  %v417 = vrsqrt.pop %v347
  %v418 = vmul.f32 %v347, %v417
  %vm419 = vcmp.eq.f32.partialorder %v347, inf
  %v420 = vsel %vm419, %v347, %v418
  %vm421 = vcmp.eq.f32.partialorder %v347, 0.0
  %v422 = vand.u32 %v347, 2147483648
  %v423 = vsel %vm421, %v422, %v420
  %v424 = vrsqrt.pop %v350
  %v425 = vmul.f32 %v350, %v424
  %vm426 = vcmp.eq.f32.partialorder %v350, inf
  %v427 = vsel %vm426, %v350, %v425
  %vm428 = vcmp.eq.f32.partialorder %v350, 0.0
  %v429 = vand.u32 %v350, 2147483648
  %v430 = vsel %vm428, %v429, %v427
  %v431 = vrsqrt.pop %v353
  %v432 = vmul.f32 %v353, %v431
  %vm433 = vcmp.eq.f32.partialorder %v353, inf
  %v434 = vsel %vm433, %v353, %v432
  %vm435 = vcmp.eq.f32.partialorder %v353, 0.0
  %v436 = vand.u32 %v353, 2147483648
  %v437 = vsel %vm435, %v436, %v434
  %v438 = vrsqrt.pop %v356
  %v439 = vmul.f32 %v356, %v438
  %vm440 = vcmp.eq.f32.partialorder %v356, inf
  %v441 = vsel %vm440, %v356, %v439
  %vm442 = vcmp.eq.f32.partialorder %v356, 0.0
  %v443 = vand.u32 %v356, 2147483648
  %v444 = vsel %vm442, %v443, %v441
  %v445 = vrsqrt.pop %v359
  %v446 = vmul.f32 %v359, %v445
  %vm447 = vcmp.eq.f32.partialorder %v359, inf
  %v448 = vsel %vm447, %v359, %v446
  %vm449 = vcmp.eq.f32.partialorder %v359, 0.0
  %v450 = vand.u32 %v359, 2147483648
  %v451 = vsel %vm449, %v450, %v448
  %v452 = vrsqrt.pop %v362
  %v453 = vmul.f32 %v362, %v452
  %vm454 = vcmp.eq.f32.partialorder %v362, inf
  %v455 = vsel %vm454, %v362, %v453
  %vm456 = vcmp.eq.f32.partialorder %v362, 0.0
  %v457 = vand.u32 %v362, 2147483648
  %v458 = vsel %vm456, %v457, %v455
  %v459 = vrsqrt.pop %v365
  %v460 = vmul.f32 %v365, %v459
  %vm461 = vcmp.eq.f32.partialorder %v365, inf
  %v462 = vsel %vm461, %v365, %v460
  %vm463 = vcmp.eq.f32.partialorder %v365, 0.0
  %v464 = vand.u32 %v365, 2147483648
  %v465 = vsel %vm463, %v464, %v462
  %v466 = vrsqrt.pop %v368
  %v467 = vmul.f32 %v368, %v466
  %vm468 = vcmp.eq.f32.partialorder %v368, inf
  %v469 = vsel %vm468, %v368, %v467
  %vm470 = vcmp.eq.f32.partialorder %v368, 0.0
  %v471 = vand.u32 %v368, 2147483648
  %v472 = vsel %vm470, %v471, %v469
  %v473 = vrsqrt.pop %v371
  %v474 = vmul.f32 %v371, %v473
  %vm475 = vcmp.eq.f32.partialorder %v371, inf
  %v476 = vsel %vm475, %v371, %v474
  %vm477 = vcmp.eq.f32.partialorder %v371, 0.0
  %v478 = vand.u32 %v371, 2147483648
  %v479 = vsel %vm477, %v478, %v476
  %v480 = vrsqrt.pop %v374
  %v481 = vmul.f32 %v374, %v480
  %vm482 = vcmp.eq.f32.partialorder %v374, inf
  %v483 = vsel %vm482, %v374, %v481
  %vm484 = vcmp.eq.f32.partialorder %v374, 0.0
  %v485 = vand.u32 %v374, 2147483648
  %v486 = vsel %vm484, %v485, %v483
  %v487 = vmax.f32 %v381, 1e-12
  %v488 = vmax.f32 %v388, 1e-12
  %v489 = vmax.f32 %v395, 1e-12
  %v490 = vmax.f32 %v402, 1e-12
  %v491 = vmax.f32 %v409, 1e-12
  %v492 = vmax.f32 %v416, 1e-12
  %v493 = vmax.f32 %v423, 1e-12
  %v494 = vmax.f32 %v430, 1e-12
  %v495 = vmax.f32 %v437, 1e-12
  %v496 = vmax.f32 %v444, 1e-12
  %v497 = vmax.f32 %v451, 1e-12
  %v498 = vmax.f32 %v458, 1e-12
  %v499 = vmax.f32 %v465, 1e-12
  %v500 = vmax.f32 %v472, 1e-12
  %v501 = vmax.f32 %v479, 1e-12
  %v502 = vmax.f32 %v486, 1e-12
  %v503 = vrcp.pop %v487
  %v504 = vmul.f32 1.0, %v503
  %v505 = vrcp.pop %v488
  %v506 = vmul.f32 1.0, %v505
  %v507 = vrcp.pop %v489
  %v508 = vmul.f32 1.0, %v507
  %v509 = vrcp.pop %v490
  %v510 = vmul.f32 1.0, %v509
  %v511 = vrcp.pop %v491
  %v512 = vmul.f32 1.0, %v511
  %v513 = vrcp.pop %v492
  %v514 = vmul.f32 1.0, %v513
  %v515 = vrcp.pop %v493
  %v516 = vmul.f32 1.0, %v515
  %v517 = vrcp.pop %v494
  %v518 = vmul.f32 1.0, %v517
  %v519 = vrcp.pop %v495
  %v520 = vmul.f32 1.0, %v519
  %v521 = vrcp.pop %v496
  %v522 = vmul.f32 1.0, %v521
  %v523 = vrcp.pop %v497
  %v524 = vmul.f32 1.0, %v523
  %v525 = vrcp.pop %v498
  %v526 = vmul.f32 1.0, %v525
  %v527 = vrcp.pop %v499
  %v528 = vmul.f32 1.0, %v527
  %v529 = vrcp.pop %v500
  %v530 = vmul.f32 1.0, %v529
  %v531 = vrcp.pop %v501
  %v532 = vmul.f32 1.0, %v531
  %v533 = vrcp.pop %v502
  %v534 = vmul.f32 1.0, %v533
  %v535 = vmul.f32 %v54, %v280
  %v536 = vmul.f32 %v55, %v282
  %v537 = vmul.f32 %v56, %v284
  %v538 = vmul.f32 %v57, %v286
  %v539 = vmul.f32 %v58, %v288
  %v540 = vmul.f32 %v59, %v290
  %v541 = vmul.f32 %v60, %v292
  %v542 = vmul.f32 %v61, %v294
  %v543 = vmul.f32 %v62, %v296
  %v544 = vmul.f32 %v63, %v298
  %v545 = vmul.f32 %v64, %v300
  %v546 = vmul.f32 %v65, %v302
  %v547 = vmul.f32 %v66, %v304
  %v548 = vmul.f32 %v67, %v306
  %v549 = vmul.f32 %v68, %v308
  %v550 = vmul.f32 %v69, %v310
  %v551 = vmul.f32 %v70, %v504
  %v552 = vmul.f32 %v71, %v506
  %v553 = vmul.f32 %v72, %v508
  %v554 = vmul.f32 %v73, %v510
  %v555 = vmul.f32 %v74, %v512
  %v556 = vmul.f32 %v75, %v514
  %v557 = vmul.f32 %v76, %v516
  %v558 = vmul.f32 %v77, %v518
  %v559 = vmul.f32 %v78, %v520
  %v560 = vmul.f32 %v79, %v522
  %v561 = vmul.f32 %v80, %v524
  %v562 = vmul.f32 %v81, %v526
  %v563 = vmul.f32 %v82, %v528
  %v564 = vmul.f32 %v83, %v530
  %v565 = vmul.f32 %v84, %v532
  %v566 = vmul.f32 %v85, %v534
  %v568 = vsel %vm102, %v535, 0
  %v571 = vsel %vm102, %v536, 0
  %v574 = vsel %vm102, %v537, 0
  %v577 = vsel %vm102, %v538, 0
  %v580 = vsel %vm102, %v539, 0
  %v583 = vsel %vm102, %v540, 0
  %v586 = vsel %vm102, %v541, 0
  %v589 = vsel %vm102, %v542, 0
  %v592 = vsel %vm102, %v543, 0
  %v595 = vsel %vm102, %v544, 0
  %v598 = vsel %vm102, %v545, 0
  %v601 = vsel %vm102, %v546, 0
  %v604 = vsel %vm102, %v547, 0
  %v607 = vsel %vm102, %v548, 0
  %v610 = vsel %vm102, %v549, 0
  %v613 = vsel %vm102, %v550, 0
  %v616 = vsel %vm102, %v551, 0
  %v619 = vsel %vm102, %v552, 0
  %v622 = vsel %vm102, %v553, 0
  %v625 = vsel %vm102, %v554, 0
  %v628 = vsel %vm102, %v555, 0
  %v631 = vsel %vm102, %v556, 0
  %v634 = vsel %vm102, %v557, 0
  %v637 = vsel %vm102, %v558, 0
  %v640 = vsel %vm102, %v559, 0
  %v643 = vsel %vm102, %v560, 0
  %v646 = vsel %vm102, %v561, 0
  %v649 = vsel %vm102, %v562, 0
  %v652 = vsel %vm102, %v563, 0
  %v655 = vsel %vm102, %v564, 0
  %v658 = vsel %vm102, %v565, 0
  %v661 = vsel %vm102, %v566, 0
  %663 = vmatprep.subr.mxu0 0.0
  %664 = vmatpush1.xpose.msra.mxu0 %v616
  %665 = vmatprep.subr.mxu0 0.0
  %666 = vmatpush1.xpose.msra.mxu0 %v619
  %667 = vmatprep.subr.mxu0 0.0
  %668 = vmatpush1.xpose.msra.mxu0 %v622
  %669 = vmatprep.subr.mxu0 0.0
  %670 = vmatpush1.xpose.msra.mxu0 %v625
  %671 = vmatprep.subr.mxu0 0.0
  %672 = vmatpush1.xpose.msra.mxu0 %v628
  %673 = vmatprep.subr.mxu0 0.0
  %674 = vmatpush1.xpose.msra.mxu0 %v631
  %675 = vmatprep.subr.mxu0 0.0
  %676 = vmatpush1.xpose.msra.mxu0 %v634
  %677 = vmatprep.subr.mxu0 0.0
  %678 = vmatpush1.xpose.msra.mxu0 %v637
  %679 = vmatprep.subr.mxu0 0.0
  %680 = vmatpush1.xpose.msra.mxu0 %v640
  %681 = vmatprep.subr.mxu0 0.0
  %682 = vmatpush1.xpose.msra.mxu0 %v643
  %683 = vmatprep.subr.mxu0 0.0
  %684 = vmatpush1.xpose.msra.mxu0 %v646
  %685 = vmatprep.subr.mxu0 0.0
  %686 = vmatpush1.xpose.msra.mxu0 %v649
  %687 = vmatprep.subr.mxu0 0.0
  %688 = vmatpush1.xpose.msra.mxu0 %v652
  %689 = vmatprep.subr.mxu0 0.0
  %690 = vmatpush1.xpose.msra.mxu0 %v655
  %691 = vmatprep.subr.mxu0 0.0
  %692 = vmatpush1.xpose.msra.mxu0 %v658
  %693 = vmatprep.subr.mxu0 0.0
  %694 = vmatpush1.xpose.msra.mxu0 %v661
  %695 = vmatprep.subr.mxu0 0.0
  %696 = vmatpush1.xpose.msra.mxu0 0.0
  %697 = vmatprep.subr.mxu0 0.0
  %698 = vmatpush1.xpose.msra.mxu0 0.0
  %699 = vmatprep.subr.mxu0 0.0
  %700 = vmatpush1.xpose.msra.mxu0 0.0
  %701 = vmatprep.subr.mxu0 0.0
  %702 = vmatpush1.xpose.msra.mxu0 0.0
  %703 = vmatprep.subr.mxu0 0.0
  %704 = vmatpush1.xpose.msra.mxu0 0.0
  %705 = vmatprep.subr.mxu0 0.0
  %706 = vmatpush1.xpose.msra.mxu0 0.0
  %707 = vmatprep.subr.mxu0 0.0
  %708 = vmatpush1.xpose.msra.mxu0 0.0
  %709 = vmatprep.subr.mxu0 0.0
  %710 = vmatpush1.xpose.msra.mxu0 0.0
  %711 = vmatprep.subr.mxu0 0.0
  %712 = vmatpush1.xpose.msra.mxu0 0.0
  %713 = vmatprep.subr.mxu0 0.0
  %714 = vmatpush1.xpose.msra.mxu0 0.0
  %715 = vmatprep.subr.mxu0 0.0
  %716 = vmatpush1.xpose.msra.mxu0 0.0
  %717 = vmatprep.subr.mxu0 0.0
  %718 = vmatpush1.xpose.msra.mxu0 0.0
  %719 = vmatprep.subr.mxu0 0.0
  %720 = vmatpush1.xpose.msra.mxu0 0.0
  %721 = vmatprep.subr.mxu0 0.0
  %722 = vmatpush1.xpose.msra.mxu0 0.0
  %723 = vmatprep.subr.mxu0 0.0
  %724 = vmatpush1.xpose.msra.mxu0 0.0
  %725 = vmatprep.subr.mxu0 0.0
  %726 = vmatpush1.xpose.msra.mxu0 0.0
  %727 = vmatprep.mubr.f32.mxu0 0.0
  %728 = vmatmul.mubr.f32.gmra.mrb[0].mxu0 %v568
  %v729 = vpop.f32.mrb[0].mxu0
  %v730 = vadd.f32 0.0, %v729
  %v731 = vpop.f32.mrb[0].mxu0
  %732 = vmatprep.mubr.f32.mxu0 0.0
  %733 = vmatmul.mubr.f32.gmra.mrb[0].mxu0 %v571
  %v734 = vpop.f32.mrb[0].mxu0
  %v735 = vadd.f32 0.0, %v734
  %v736 = vpop.f32.mrb[0].mxu0
  %737 = vmatprep.mubr.f32.mxu0 0.0
  %738 = vmatmul.mubr.f32.gmra.mrb[0].mxu0 %v574
  %v739 = vpop.f32.mrb[0].mxu0
  %v740 = vadd.f32 0.0, %v739
  %v741 = vpop.f32.mrb[0].mxu0
  %742 = vmatprep.mubr.f32.mxu0 0.0
  %743 = vmatmul.mubr.f32.gmra.mrb[0].mxu0 %v577
  %v744 = vpop.f32.mrb[0].mxu0
  %v745 = vadd.f32 0.0, %v744
  %v746 = vpop.f32.mrb[0].mxu0
  %747 = vmatprep.mubr.f32.mxu0 0.0
  %748 = vmatmul.mubr.f32.gmra.mrb[0].mxu0 %v580
  %v749 = vpop.f32.mrb[0].mxu0
  %v750 = vadd.f32 0.0, %v749
  %v751 = vpop.f32.mrb[0].mxu0
  %752 = vmatprep.mubr.f32.mxu0 0.0
  %753 = vmatmul.mubr.f32.gmra.mrb[0].mxu0 %v583
  %v754 = vpop.f32.mrb[0].mxu0
  %v755 = vadd.f32 0.0, %v754
  %v756 = vpop.f32.mrb[0].mxu0
  %757 = vmatprep.mubr.f32.mxu0 0.0
  %758 = vmatmul.mubr.f32.gmra.mrb[0].mxu0 %v586
  %v759 = vpop.f32.mrb[0].mxu0
  %v760 = vadd.f32 0.0, %v759
  %v761 = vpop.f32.mrb[0].mxu0
  %762 = vmatprep.mubr.f32.mxu0 0.0
  %763 = vmatmul.mubr.f32.gmra.mrb[0].mxu0 %v589
  %v764 = vpop.f32.mrb[0].mxu0
  %v765 = vadd.f32 0.0, %v764
  %v766 = vpop.f32.mrb[0].mxu0
  %767 = vmatprep.mubr.f32.mxu0 0.0
  %768 = vmatmul.mubr.f32.gmra.mrb[0].mxu0 %v592
  %v769 = vpop.f32.mrb[0].mxu0
  %v770 = vadd.f32 0.0, %v769
  %v771 = vpop.f32.mrb[0].mxu0
  %772 = vmatprep.mubr.f32.mxu0 0.0
  %773 = vmatmul.mubr.f32.gmra.mrb[0].mxu0 %v595
  %v774 = vpop.f32.mrb[0].mxu0
  %v775 = vadd.f32 0.0, %v774
  %v776 = vpop.f32.mrb[0].mxu0
  %777 = vmatprep.mubr.f32.mxu0 0.0
  %778 = vmatmul.mubr.f32.gmra.mrb[0].mxu0 %v598
  %v779 = vpop.f32.mrb[0].mxu0
  %v780 = vadd.f32 0.0, %v779
  %v781 = vpop.f32.mrb[0].mxu0
  %782 = vmatprep.mubr.f32.mxu0 0.0
  %783 = vmatmul.mubr.f32.gmra.mrb[0].mxu0 %v601
  %v784 = vpop.f32.mrb[0].mxu0
  %v785 = vadd.f32 0.0, %v784
  %v786 = vpop.f32.mrb[0].mxu0
  %787 = vmatprep.mubr.f32.mxu0 0.0
  %788 = vmatmul.mubr.f32.gmra.mrb[0].mxu0 %v604
  %v789 = vpop.f32.mrb[0].mxu0
  %v790 = vadd.f32 0.0, %v789
  %v791 = vpop.f32.mrb[0].mxu0
  %792 = vmatprep.mubr.f32.mxu0 0.0
  %793 = vmatmul.mubr.f32.gmra.mrb[0].mxu0 %v607
  %v794 = vpop.f32.mrb[0].mxu0
  %v795 = vadd.f32 0.0, %v794
  %v796 = vpop.f32.mrb[0].mxu0
  %797 = vmatprep.mubr.f32.mxu0 0.0
  %798 = vmatmul.mubr.f32.gmra.mrb[0].mxu0 %v610
  %v799 = vpop.f32.mrb[0].mxu0
  %v800 = vadd.f32 0.0, %v799
  %v801 = vpop.f32.mrb[0].mxu0
  %802 = vmatprep.mubr.f32.mxu0 0.0
  %803 = vmatmul.mubr.f32.gmra.mrb[0].mxu0 %v613
  %v804 = vpop.f32.mrb[0].mxu0
  %v805 = vadd.f32 0.0, %v804
  %v806 = vpop.f32.mrb[0].mxu0
  %807 = vdwg.mxu0
  %v808 = vmul.f32 %v730, 2.0
  %v809 = vmul.f32 %v735, 2.0
  %v810 = vmul.f32 %v740, 2.0
  %v811 = vmul.f32 %v745, 2.0
  %v812 = vmul.f32 %v750, 2.0
  %v813 = vmul.f32 %v755, 2.0
  %v814 = vmul.f32 %v760, 2.0
  %v815 = vmul.f32 %v765, 2.0
  %v816 = vmul.f32 %v770, 2.0
  %v817 = vmul.f32 %v775, 2.0
  %v818 = vmul.f32 %v780, 2.0
  %v819 = vmul.f32 %v785, 2.0
  %v820 = vmul.f32 %v790, 2.0
  %v821 = vmul.f32 %v795, 2.0
  %v822 = vmul.f32 %v800, 2.0
  %v823 = vmul.f32 %v805, 2.0
  %v824 = vsub.f32 2.0, %v808
  %v825 = vsub.f32 2.0, %v809
  %v826 = vsub.f32 2.0, %v810
  %v827 = vsub.f32 2.0, %v811
  %v828 = vsub.f32 2.0, %v812
  %v829 = vsub.f32 2.0, %v813
  %v830 = vsub.f32 2.0, %v814
  %v831 = vsub.f32 2.0, %v815
  %v832 = vsub.f32 2.0, %v816
  %v833 = vsub.f32 2.0, %v817
  %v834 = vsub.f32 2.0, %v818
  %v835 = vsub.f32 2.0, %v819
  %v836 = vsub.f32 2.0, %v820
  %v837 = vsub.f32 2.0, %v821
  %v838 = vsub.f32 2.0, %v822
  %v839 = vsub.f32 2.0, %v823
  %v840 = vmax.f32 %v824, 1e-12
  %v841 = vmax.f32 %v825, 1e-12
  %v842 = vmax.f32 %v826, 1e-12
  %v843 = vmax.f32 %v827, 1e-12
  %v844 = vmax.f32 %v828, 1e-12
  %v845 = vmax.f32 %v829, 1e-12
  %v846 = vmax.f32 %v830, 1e-12
  %v847 = vmax.f32 %v831, 1e-12
  %v848 = vmax.f32 %v832, 1e-12
  %v849 = vmax.f32 %v833, 1e-12
  %v850 = vmax.f32 %v834, 1e-12
  %v851 = vmax.f32 %v835, 1e-12
  %v852 = vmax.f32 %v836, 1e-12
  %v853 = vmax.f32 %v837, 1e-12
  %v854 = vmax.f32 %v838, 1e-12
  %v855 = vmax.f32 %v839, 1e-12
  %v856 = vld [vmem:[%s2] sm:$0xff]
  %v857 = vld [vmem:[%s2 + $0x8] sm:$0xff]
  %v858 = vld [vmem:[%s2 + $0x10] sm:$0xff]
  %v859 = vld [vmem:[%s2 + $0x18] sm:$0xff]
  %v860 = vld [vmem:[%s2 + $0x20] sm:$0xff]
  %v861 = vld [vmem:[%s2 + $0x28] sm:$0xff]
  %v862 = vld [vmem:[%s2 + $0x30] sm:$0xff]
  %v863 = vld [vmem:[%s2 + $0x38] sm:$0xff]
  %v864 = vld [vmem:[%s2 + $0x40] sm:$0xff]
  %v865 = vld [vmem:[%s2 + $0x48] sm:$0xff]
  %v866 = vld [vmem:[%s2 + $0x50] sm:$0xff]
  %v867 = vld [vmem:[%s2 + $0x58] sm:$0xff]
  %v868 = vld [vmem:[%s2 + $0x60] sm:$0xff]
  %v869 = vld [vmem:[%s2 + $0x68] sm:$0xff]
  %v870 = vld [vmem:[%s2 + $0x70] sm:$0xff]
  %v871 = vld [vmem:[%s2 + $0x78] sm:$0xff]
  %v872 = vld [vmem:[%s3] sm:$0x1]
  %873 = vset.pattern.permute.xlu0 0
  %874 = vperm.xlu0 %873, %v856
  %v875 = vpop.permute.xlu0 %874
  %876 = vset.pattern.permute.xlu0 0
  %877 = vperm.xlu0 %876, %v857
  %v878 = vpop.permute.xlu0 %877
  %879 = vset.pattern.permute.xlu0 0
  %880 = vperm.xlu0 %879, %v858
  %v881 = vpop.permute.xlu0 %880
  %882 = vset.pattern.permute.xlu0 0
  %883 = vperm.xlu0 %882, %v859
  %v884 = vpop.permute.xlu0 %883
  %885 = vset.pattern.permute.xlu0 0
  %886 = vperm.xlu0 %885, %v860
  %v887 = vpop.permute.xlu0 %886
  %888 = vset.pattern.permute.xlu0 0
  %889 = vperm.xlu0 %888, %v861
  %v890 = vpop.permute.xlu0 %889
  %891 = vset.pattern.permute.xlu0 0
  %892 = vperm.xlu0 %891, %v862
  %v893 = vpop.permute.xlu0 %892
  %894 = vset.pattern.permute.xlu0 0
  %895 = vperm.xlu0 %894, %v863
  %v896 = vpop.permute.xlu0 %895
  %897 = vset.pattern.permute.xlu0 0
  %898 = vperm.xlu0 %897, %v864
  %v899 = vpop.permute.xlu0 %898
  %900 = vset.pattern.permute.xlu0 0
  %901 = vperm.xlu0 %900, %v865
  %v902 = vpop.permute.xlu0 %901
  %903 = vset.pattern.permute.xlu0 0
  %904 = vperm.xlu0 %903, %v866
  %v905 = vpop.permute.xlu0 %904
  %906 = vset.pattern.permute.xlu0 0
  %907 = vperm.xlu0 %906, %v867
  %v908 = vpop.permute.xlu0 %907
  %909 = vset.pattern.permute.xlu0 0
  %910 = vperm.xlu0 %909, %v868
  %v911 = vpop.permute.xlu0 %910
  %912 = vset.pattern.permute.xlu0 0
  %913 = vperm.xlu0 %912, %v869
  %v914 = vpop.permute.xlu0 %913
  %915 = vset.pattern.permute.xlu0 0
  %916 = vperm.xlu0 %915, %v870
  %v917 = vpop.permute.xlu0 %916
  %918 = vset.pattern.permute.xlu0 0
  %919 = vperm.xlu0 %918, %v871
  %v920 = vpop.permute.xlu0 %919
  %v921 = vlaneseq
  %v922 = vshrl.u32 %v921, 7
  %v923 = vsub.s32 0, %v922
  %v924 = vrot.slane %v872, %v923
  %vm925 = vcmp.eq.s32.totalorder %v875, %v924
  %vm926 = vcmp.eq.s32.totalorder %v878, %v924
  %vm927 = vcmp.eq.s32.totalorder %v881, %v924
  %vm928 = vcmp.eq.s32.totalorder %v884, %v924
  %vm929 = vcmp.eq.s32.totalorder %v887, %v924
  %vm930 = vcmp.eq.s32.totalorder %v890, %v924
  %vm931 = vcmp.eq.s32.totalorder %v893, %v924
  %vm932 = vcmp.eq.s32.totalorder %v896, %v924
  %vm933 = vcmp.eq.s32.totalorder %v899, %v924
  %vm934 = vcmp.eq.s32.totalorder %v902, %v924
  %vm935 = vcmp.eq.s32.totalorder %v905, %v924
  %vm936 = vcmp.eq.s32.totalorder %v908, %v924
  %vm937 = vcmp.eq.s32.totalorder %v911, %v924
  %vm938 = vcmp.eq.s32.totalorder %v914, %v924
  %vm939 = vcmp.eq.s32.totalorder %v917, %v924
  %vm940 = vcmp.eq.s32.totalorder %v920, %v924
  %v941 = vlaneseq
  %v942 = vshrl.u32 %v941, 7
  %v943 = vadd.s32 %v942, 8
  %v944 = vadd.s32 %v942, 16
  %v945 = vadd.s32 %v942, 24
  %v946 = vadd.s32 %v942, 32
  %v947 = vadd.s32 %v942, 40
  %v948 = vadd.s32 %v942, 48
  %v949 = vadd.s32 %v942, 56
  %v950 = vadd.s32 %v942, 64
  %v951 = vadd.s32 %v942, 72
  %v952 = vadd.s32 %v942, 80
  %v953 = vadd.s32 %v942, 88
  %v954 = vadd.s32 %v942, 96
  %v955 = vadd.s32 %v942, 104
  %v956 = vadd.s32 %v942, 112
  %v957 = vadd.s32 %v942, 120
  %s958 = smul.u32 0, 128
  %v959 = vstv %s958
  %v960 = vadd.s32 %v942, %v959
  %v961 = vadd.s32 %v943, %v959
  %v962 = vadd.s32 %v944, %v959
  %v963 = vadd.s32 %v945, %v959
  %v964 = vadd.s32 %v946, %v959
  %v965 = vadd.s32 %v947, %v959
  %v966 = vadd.s32 %v948, %v959
  %v967 = vadd.s32 %v949, %v959
  %v968 = vadd.s32 %v950, %v959
  %v969 = vadd.s32 %v951, %v959
  %v970 = vadd.s32 %v952, %v959
  %v971 = vadd.s32 %v953, %v959
  %v972 = vadd.s32 %v954, %v959
  %v973 = vadd.s32 %v955, %v959
  %v974 = vadd.s32 %v956, %v959
  %v975 = vadd.s32 %v957, %v959
  %v976 = vlaneseq
  %v977 = vand.u32 %v976, 127
  %s978 = smul.u32 0, 128
  %v979 = vstv %s978
  %v980 = vadd.s32 %v977, %v979
  %vm981 = vcmp.ne.s32.totalorder %v960, %v980
  %vm982 = vcmp.ne.s32.totalorder %v961, %v980
  %vm983 = vcmp.ne.s32.totalorder %v962, %v980
  %vm984 = vcmp.ne.s32.totalorder %v963, %v980
  %vm985 = vcmp.ne.s32.totalorder %v964, %v980
  %vm986 = vcmp.ne.s32.totalorder %v965, %v980
  %vm987 = vcmp.ne.s32.totalorder %v966, %v980
  %vm988 = vcmp.ne.s32.totalorder %v967, %v980
  %vm989 = vcmp.ne.s32.totalorder %v968, %v980
  %vm990 = vcmp.ne.s32.totalorder %v969, %v980
  %vm991 = vcmp.ne.s32.totalorder %v970, %v980
  %vm992 = vcmp.ne.s32.totalorder %v971, %v980
  %vm993 = vcmp.ne.s32.totalorder %v972, %v980
  %vm994 = vcmp.ne.s32.totalorder %v973, %v980
  %vm995 = vcmp.ne.s32.totalorder %v974, %v980
  %vm996 = vcmp.ne.s32.totalorder %v975, %v980
  %vm997 = vmand %vm925, %vm981
  %vm998 = vmand %vm926, %vm982
  %vm999 = vmand %vm927, %vm983
  %vm1000 = vmand %vm928, %vm984
  %vm1001 = vmand %vm929, %vm985
  %vm1002 = vmand %vm930, %vm986
  %vm1003 = vmand %vm931, %vm987
  %vm1004 = vmand %vm932, %vm988
  %vm1005 = vmand %vm933, %vm989
  %vm1006 = vmand %vm934, %vm990
  %vm1007 = vmand %vm935, %vm991
  %vm1008 = vmand %vm936, %vm992
  %vm1009 = vmand %vm937, %vm993
  %vm1010 = vmand %vm938, %vm994
  %vm1011 = vmand %vm939, %vm995
  %vm1012 = vmand %vm940, %vm996
  %vm1013 = vmxor %vm925, 1
  %vm1014 = vmxor %vm926, 1
  %vm1015 = vmxor %vm927, 1
  %vm1016 = vmxor %vm928, 1
  %vm1017 = vmxor %vm929, 1
  %vm1018 = vmxor %vm930, 1
  %vm1019 = vmxor %vm931, 1
  %vm1020 = vmxor %vm932, 1
  %vm1021 = vmxor %vm933, 1
  %vm1022 = vmxor %vm934, 1
  %vm1023 = vmxor %vm935, 1
  %vm1024 = vmxor %vm936, 1
  %vm1025 = vmxor %vm937, 1
  %vm1026 = vmxor %vm938, 1
  %vm1027 = vmxor %vm939, 1
  %vm1028 = vmxor %vm940, 1
  %vm1029 = vcmp.lt.s32.totalorder %v980, 8
  %v1030 = vsel %vm1029, 1, 0
  %vm1031 = vcmp.eq.s32.totalorder %v1030, 1
  %vm1032 = vmand %vm997, %vm1031
  %vm1033 = vmand %vm998, %vm1031
  %vm1034 = vmand %vm999, %vm1031
  %vm1035 = vmand %vm1000, %vm1031
  %vm1036 = vmand %vm1001, %vm1031
  %vm1037 = vmand %vm1002, %vm1031
  %vm1038 = vmand %vm1003, %vm1031
  %vm1039 = vmand %vm1004, %vm1031
  %vm1040 = vmand %vm1005, %vm1031
  %vm1041 = vmand %vm1006, %vm1031
  %vm1042 = vmand %vm1007, %vm1031
  %vm1043 = vmand %vm1008, %vm1031
  %vm1044 = vmand %vm1009, %vm1031
  %vm1045 = vmand %vm1010, %vm1031
  %vm1046 = vmand %vm1011, %vm1031
  %vm1047 = vmand %vm1012, %vm1031
  %vm1048 = vmand %vm1013, %vm1031
  %vm1049 = vmand %vm1014, %vm1031
  %vm1050 = vmand %vm1015, %vm1031
  %vm1051 = vmand %vm1016, %vm1031
  %vm1052 = vmand %vm1017, %vm1031
  %vm1053 = vmand %vm1018, %vm1031
  %vm1054 = vmand %vm1019, %vm1031
  %vm1055 = vmand %vm1020, %vm1031
  %vm1056 = vmand %vm1021, %vm1031
  %vm1057 = vmand %vm1022, %vm1031
  %vm1058 = vmand %vm1023, %vm1031
  %vm1059 = vmand %vm1024, %vm1031
  %vm1060 = vmand %vm1025, %vm1031
  %vm1061 = vmand %vm1026, %vm1031
  %vm1062 = vmand %vm1027, %vm1031
  %vm1063 = vmand %vm1028, %vm1031
  %v1064 = vld [vmem:[#allocation2] sm:$0xff]
  %v1065 = vld [vmem:[#allocation2 + $0x8] sm:$0xff]
  %v1066 = vld [vmem:[#allocation2 + $0x10] sm:$0xff]
  %v1067 = vld [vmem:[#allocation2 + $0x18] sm:$0xff]
  %v1068 = vld [vmem:[#allocation2 + $0x20] sm:$0xff]
  %v1069 = vld [vmem:[#allocation2 + $0x28] sm:$0xff]
  %v1070 = vld [vmem:[#allocation2 + $0x30] sm:$0xff]
  %v1071 = vld [vmem:[#allocation2 + $0x38] sm:$0xff]
  %v1072 = vld [vmem:[#allocation2 + $0x40] sm:$0xff]
  %v1073 = vld [vmem:[#allocation2 + $0x48] sm:$0xff]
  %v1074 = vld [vmem:[#allocation2 + $0x50] sm:$0xff]
  %v1075 = vld [vmem:[#allocation2 + $0x58] sm:$0xff]
  %v1076 = vld [vmem:[#allocation2 + $0x60] sm:$0xff]
  %v1077 = vld [vmem:[#allocation2 + $0x68] sm:$0xff]
  %v1078 = vld [vmem:[#allocation2 + $0x70] sm:$0xff]
  %v1079 = vld [vmem:[#allocation2 + $0x78] sm:$0xff]
  %v1080 = vsel %vm1032, %v840, -inf
  %v1081 = vsel %vm1033, %v841, -inf
  %v1082 = vsel %vm1034, %v842, -inf
  %v1083 = vsel %vm1035, %v843, -inf
  %v1084 = vsel %vm1036, %v844, -inf
  %v1085 = vsel %vm1037, %v845, -inf
  %v1086 = vsel %vm1038, %v846, -inf
  %v1087 = vsel %vm1039, %v847, -inf
  %v1088 = vsel %vm1040, %v848, -inf
  %v1089 = vsel %vm1041, %v849, -inf
  %v1090 = vsel %vm1042, %v850, -inf
  %v1091 = vsel %vm1043, %v851, -inf
  %v1092 = vsel %vm1044, %v852, -inf
  %v1093 = vsel %vm1045, %v853, -inf
  %v1094 = vsel %vm1046, %v854, -inf
  %v1095 = vsel %vm1047, %v855, -inf
  %1096 = vmax.xlane.f32.xlu0 %v1080
  %v1097 = vpop.xlane.xlu0 %1096
  %1098 = vmax.xlane.f32.xlu0 %v1081
  %v1099 = vpop.xlane.xlu0 %1098
  %1100 = vmax.xlane.f32.xlu0 %v1082
  %v1101 = vpop.xlane.xlu0 %1100
  %1102 = vmax.xlane.f32.xlu0 %v1083
  %v1103 = vpop.xlane.xlu0 %1102
  %1104 = vmax.xlane.f32.xlu0 %v1084
  %v1105 = vpop.xlane.xlu0 %1104
  %1106 = vmax.xlane.f32.xlu0 %v1085
  %v1107 = vpop.xlane.xlu0 %1106
  %1108 = vmax.xlane.f32.xlu0 %v1086
  %v1109 = vpop.xlane.xlu0 %1108
  %1110 = vmax.xlane.f32.xlu0 %v1087
  %v1111 = vpop.xlane.xlu0 %1110
  %1112 = vmax.xlane.f32.xlu0 %v1088
  %v1113 = vpop.xlane.xlu0 %1112
  %1114 = vmax.xlane.f32.xlu0 %v1089
  %v1115 = vpop.xlane.xlu0 %1114
  %1116 = vmax.xlane.f32.xlu0 %v1090
  %v1117 = vpop.xlane.xlu0 %1116
  %1118 = vmax.xlane.f32.xlu0 %v1091
  %v1119 = vpop.xlane.xlu0 %1118
  %1120 = vmax.xlane.f32.xlu0 %v1092
  %v1121 = vpop.xlane.xlu0 %1120
  %1122 = vmax.xlane.f32.xlu0 %v1093
  %v1123 = vpop.xlane.xlu0 %1122
  %1124 = vmax.xlane.f32.xlu0 %v1094
  %v1125 = vpop.xlane.xlu0 %1124
  %1126 = vmax.xlane.f32.xlu0 %v1095
  %v1127 = vpop.xlane.xlu0 %1126
  %v1128 = vmax.f32 %v1064, %v1097
  %v1129 = vmax.f32 %v1065, %v1099
  %v1130 = vmax.f32 %v1066, %v1101
  %v1131 = vmax.f32 %v1067, %v1103
  %v1132 = vmax.f32 %v1068, %v1105
  %v1133 = vmax.f32 %v1069, %v1107
  %v1134 = vmax.f32 %v1070, %v1109
  %v1135 = vmax.f32 %v1071, %v1111
  %v1136 = vmax.f32 %v1072, %v1113
  %v1137 = vmax.f32 %v1073, %v1115
  %v1138 = vmax.f32 %v1074, %v1117
  %v1139 = vmax.f32 %v1075, %v1119
  %v1140 = vmax.f32 %v1076, %v1121
  %v1141 = vmax.f32 %v1077, %v1123
  %v1142 = vmax.f32 %v1078, %v1125
  %v1143 = vmax.f32 %v1079, %v1127
  %vm1144 = vcmask 7168
  %1145 = vst.msk [vmem:[#allocation2] sm:$0xff] %vm1144, %v1128
  %1146 = vst.msk [vmem:[#allocation2 + $0x8] sm:$0xff] %vm1144, %v1129
  %1147 = vst.msk [vmem:[#allocation2 + $0x10] sm:$0xff] %vm1144, %v1130
  %1148 = vst.msk [vmem:[#allocation2 + $0x18] sm:$0xff] %vm1144, %v1131
  %1149 = vst.msk [vmem:[#allocation2 + $0x20] sm:$0xff] %vm1144, %v1132
  %1150 = vst.msk [vmem:[#allocation2 + $0x28] sm:$0xff] %vm1144, %v1133
  %1151 = vst.msk [vmem:[#allocation2 + $0x30] sm:$0xff] %vm1144, %v1134
  %1152 = vst.msk [vmem:[#allocation2 + $0x38] sm:$0xff] %vm1144, %v1135
  %1153 = vst.msk [vmem:[#allocation2 + $0x40] sm:$0xff] %vm1144, %v1136
  %1154 = vst.msk [vmem:[#allocation2 + $0x48] sm:$0xff] %vm1144, %v1137
  %1155 = vst.msk [vmem:[#allocation2 + $0x50] sm:$0xff] %vm1144, %v1138
  %1156 = vst.msk [vmem:[#allocation2 + $0x58] sm:$0xff] %vm1144, %v1139
  %1157 = vst.msk [vmem:[#allocation2 + $0x60] sm:$0xff] %vm1144, %v1140
  %1158 = vst.msk [vmem:[#allocation2 + $0x68] sm:$0xff] %vm1144, %v1141
  %1159 = vst.msk [vmem:[#allocation2 + $0x70] sm:$0xff] %vm1144, %v1142
  %1160 = vst.msk [vmem:[#allocation2 + $0x78] sm:$0xff] %vm1144, %v1143
  %v1161 = vld [vmem:[#allocation3] sm:$0xff]
  %v1162 = vld [vmem:[#allocation3 + $0x8] sm:$0xff]
  %v1163 = vld [vmem:[#allocation3 + $0x10] sm:$0xff]
  %v1164 = vld [vmem:[#allocation3 + $0x18] sm:$0xff]
  %v1165 = vld [vmem:[#allocation3 + $0x20] sm:$0xff]
  %v1166 = vld [vmem:[#allocation3 + $0x28] sm:$0xff]
  %v1167 = vld [vmem:[#allocation3 + $0x30] sm:$0xff]
  %v1168 = vld [vmem:[#allocation3 + $0x38] sm:$0xff]
  %v1169 = vld [vmem:[#allocation3 + $0x40] sm:$0xff]
  %v1170 = vld [vmem:[#allocation3 + $0x48] sm:$0xff]
  %v1171 = vld [vmem:[#allocation3 + $0x50] sm:$0xff]
  %v1172 = vld [vmem:[#allocation3 + $0x58] sm:$0xff]
  %v1173 = vld [vmem:[#allocation3 + $0x60] sm:$0xff]
  %v1174 = vld [vmem:[#allocation3 + $0x68] sm:$0xff]
  %v1175 = vld [vmem:[#allocation3 + $0x70] sm:$0xff]
  %v1176 = vld [vmem:[#allocation3 + $0x78] sm:$0xff]
  %v1177 = vsel %vm1048, %v840, inf
  %v1178 = vsel %vm1049, %v841, inf
  %v1179 = vsel %vm1050, %v842, inf
  %v1180 = vsel %vm1051, %v843, inf
  %v1181 = vsel %vm1052, %v844, inf
  %v1182 = vsel %vm1053, %v845, inf
  %v1183 = vsel %vm1054, %v846, inf
  %v1184 = vsel %vm1055, %v847, inf
  %v1185 = vsel %vm1056, %v848, inf
  %v1186 = vsel %vm1057, %v849, inf
  %v1187 = vsel %vm1058, %v850, inf
  %v1188 = vsel %vm1059, %v851, inf
  %v1189 = vsel %vm1060, %v852, inf
  %v1190 = vsel %vm1061, %v853, inf
  %v1191 = vsel %vm1062, %v854, inf
  %v1192 = vsel %vm1063, %v855, inf
  %1193 = vmin.xlane.f32.xlu0 %v1177
  %v1194 = vpop.xlane.xlu0 %1193
  %1195 = vmin.xlane.f32.xlu0 %v1178
  %v1196 = vpop.xlane.xlu0 %1195
  %1197 = vmin.xlane.f32.xlu0 %v1179
  %v1198 = vpop.xlane.xlu0 %1197
  %1199 = vmin.xlane.f32.xlu0 %v1180
  %v1200 = vpop.xlane.xlu0 %1199
  %1201 = vmin.xlane.f32.xlu0 %v1181
  %v1202 = vpop.xlane.xlu0 %1201
  %1203 = vmin.xlane.f32.xlu0 %v1182
  %v1204 = vpop.xlane.xlu0 %1203
  %1205 = vmin.xlane.f32.xlu0 %v1183
  %v1206 = vpop.xlane.xlu0 %1205
  %1207 = vmin.xlane.f32.xlu0 %v1184
  %v1208 = vpop.xlane.xlu0 %1207
  %1209 = vmin.xlane.f32.xlu0 %v1185
  %v1210 = vpop.xlane.xlu0 %1209
  %1211 = vmin.xlane.f32.xlu0 %v1186
  %v1212 = vpop.xlane.xlu0 %1211
  %1213 = vmin.xlane.f32.xlu0 %v1187
  %v1214 = vpop.xlane.xlu0 %1213
  %1215 = vmin.xlane.f32.xlu0 %v1188
  %v1216 = vpop.xlane.xlu0 %1215
  %1217 = vmin.xlane.f32.xlu0 %v1189
  %v1218 = vpop.xlane.xlu0 %1217
  %1219 = vmin.xlane.f32.xlu0 %v1190
  %v1220 = vpop.xlane.xlu0 %1219
  %1221 = vmin.xlane.f32.xlu0 %v1191
  %v1222 = vpop.xlane.xlu0 %1221
  %1223 = vmin.xlane.f32.xlu0 %v1192
  %v1224 = vpop.xlane.xlu0 %1223
  %v1225 = vmin.f32 %v1161, %v1194
  %v1226 = vmin.f32 %v1162, %v1196
  %v1227 = vmin.f32 %v1163, %v1198
  %v1228 = vmin.f32 %v1164, %v1200
  %v1229 = vmin.f32 %v1165, %v1202
  %v1230 = vmin.f32 %v1166, %v1204
  %v1231 = vmin.f32 %v1167, %v1206
  %v1232 = vmin.f32 %v1168, %v1208
  %v1233 = vmin.f32 %v1169, %v1210
  %v1234 = vmin.f32 %v1170, %v1212
  %v1235 = vmin.f32 %v1171, %v1214
  %v1236 = vmin.f32 %v1172, %v1216
  %v1237 = vmin.f32 %v1173, %v1218
  %v1238 = vmin.f32 %v1174, %v1220
  %v1239 = vmin.f32 %v1175, %v1222
  %v1240 = vmin.f32 %v1176, %v1224
  %1241 = vst.msk [vmem:[#allocation3] sm:$0xff] %vm1144, %v1225
  %1242 = vst.msk [vmem:[#allocation3 + $0x8] sm:$0xff] %vm1144, %v1226
  %1243 = vst.msk [vmem:[#allocation3 + $0x10] sm:$0xff] %vm1144, %v1227
  %1244 = vst.msk [vmem:[#allocation3 + $0x18] sm:$0xff] %vm1144, %v1228
  %1245 = vst.msk [vmem:[#allocation3 + $0x20] sm:$0xff] %vm1144, %v1229
  %1246 = vst.msk [vmem:[#allocation3 + $0x28] sm:$0xff] %vm1144, %v1230
  %1247 = vst.msk [vmem:[#allocation3 + $0x30] sm:$0xff] %vm1144, %v1231
  %1248 = vst.msk [vmem:[#allocation3 + $0x38] sm:$0xff] %vm1144, %v1232
  %1249 = vst.msk [vmem:[#allocation3 + $0x40] sm:$0xff] %vm1144, %v1233
  %1250 = vst.msk [vmem:[#allocation3 + $0x48] sm:$0xff] %vm1144, %v1234
  %1251 = vst.msk [vmem:[#allocation3 + $0x50] sm:$0xff] %vm1144, %v1235
  %1252 = vst.msk [vmem:[#allocation3 + $0x58] sm:$0xff] %vm1144, %v1236
  %1253 = vst.msk [vmem:[#allocation3 + $0x60] sm:$0xff] %vm1144, %v1237
  %1254 = vst.msk [vmem:[#allocation3 + $0x68] sm:$0xff] %vm1144, %v1238
  %1255 = vst.msk [vmem:[#allocation3 + $0x70] sm:$0xff] %vm1144, %v1239
  %1256 = vst.msk [vmem:[#allocation3 + $0x78] sm:$0xff] %vm1144, %v1240
  // Predicated region
  $region22: #{tpu_custom_call.1} parent=0 // pred_check
    %p1257 = pneg %p17
  $region23: #{tpu_custom_call.1} parent=0 // pred_check_branch
    %1259 = sbr.rel (%p1257) target = $region25
  $region24: #{tpu_custom_call.1} parent=0 // pred_region
    %v1260 = vld [vmem:[#allocation2] sm:$0xff]
    %v1261 = vld [vmem:[#allocation2 + $0x8] sm:$0xff]
    %v1262 = vld [vmem:[#allocation2 + $0x10] sm:$0xff]
    %v1263 = vld [vmem:[#allocation2 + $0x18] sm:$0xff]
    %v1264 = vld [vmem:[#allocation2 + $0x20] sm:$0xff]
    %v1265 = vld [vmem:[#allocation2 + $0x28] sm:$0xff]
    %v1266 = vld [vmem:[#allocation2 + $0x30] sm:$0xff]
    %v1267 = vld [vmem:[#allocation2 + $0x38] sm:$0xff]
    %v1268 = vld [vmem:[#allocation2 + $0x40] sm:$0xff]
    %v1269 = vld [vmem:[#allocation2 + $0x48] sm:$0xff]
    %v1270 = vld [vmem:[#allocation2 + $0x50] sm:$0xff]
    %v1271 = vld [vmem:[#allocation2 + $0x58] sm:$0xff]
    %v1272 = vld [vmem:[#allocation2 + $0x60] sm:$0xff]
    %v1273 = vld [vmem:[#allocation2 + $0x68] sm:$0xff]
    %v1274 = vld [vmem:[#allocation2 + $0x70] sm:$0xff]
    %v1275 = vld [vmem:[#allocation2 + $0x78] sm:$0xff]
    %v1276 = vld [vmem:[#allocation3] sm:$0xff]
    %v1277 = vld [vmem:[#allocation3 + $0x8] sm:$0xff]
    %v1278 = vld [vmem:[#allocation3 + $0x10] sm:$0xff]
    %v1279 = vld [vmem:[#allocation3 + $0x18] sm:$0xff]
    %v1280 = vld [vmem:[#allocation3 + $0x20] sm:$0xff]
    %v1281 = vld [vmem:[#allocation3 + $0x28] sm:$0xff]
    %v1282 = vld [vmem:[#allocation3 + $0x30] sm:$0xff]
    %v1283 = vld [vmem:[#allocation3 + $0x38] sm:$0xff]
    %v1284 = vld [vmem:[#allocation3 + $0x40] sm:$0xff]
    %v1285 = vld [vmem:[#allocation3 + $0x48] sm:$0xff]
    %v1286 = vld [vmem:[#allocation3 + $0x50] sm:$0xff]
    %v1287 = vld [vmem:[#allocation3 + $0x58] sm:$0xff]
    %v1288 = vld [vmem:[#allocation3 + $0x60] sm:$0xff]
    %v1289 = vld [vmem:[#allocation3 + $0x68] sm:$0xff]
    %v1290 = vld [vmem:[#allocation3 + $0x70] sm:$0xff]
    %v1291 = vld [vmem:[#allocation3 + $0x78] sm:$0xff]
    %vm1292 = vcmp.gt.f32.partialorder %v1260, -inf
    %vm1293 = vcmp.gt.f32.partialorder %v1261, -inf
    %vm1294 = vcmp.gt.f32.partialorder %v1262, -inf
    %vm1295 = vcmp.gt.f32.partialorder %v1263, -inf
    %vm1296 = vcmp.gt.f32.partialorder %v1264, -inf
    %vm1297 = vcmp.gt.f32.partialorder %v1265, -inf
    %vm1298 = vcmp.gt.f32.partialorder %v1266, -inf
    %vm1299 = vcmp.gt.f32.partialorder %v1267, -inf
    %vm1300 = vcmp.gt.f32.partialorder %v1268, -inf
    %vm1301 = vcmp.gt.f32.partialorder %v1269, -inf
    %vm1302 = vcmp.gt.f32.partialorder %v1270, -inf
    %vm1303 = vcmp.gt.f32.partialorder %v1271, -inf
    %vm1304 = vcmp.gt.f32.partialorder %v1272, -inf
    %vm1305 = vcmp.gt.f32.partialorder %v1273, -inf
    %vm1306 = vcmp.gt.f32.partialorder %v1274, -inf
    %vm1307 = vcmp.gt.f32.partialorder %v1275, -inf
    %v1308 = vmax.f32 %v1260, 1e-12
    %v1309 = vmax.f32 %v1261, 1e-12
    %v1310 = vmax.f32 %v1262, 1e-12
    %v1311 = vmax.f32 %v1263, 1e-12
    %v1312 = vmax.f32 %v1264, 1e-12
    %v1313 = vmax.f32 %v1265, 1e-12
    %v1314 = vmax.f32 %v1266, 1e-12
    %v1315 = vmax.f32 %v1267, 1e-12
    %v1316 = vmax.f32 %v1268, 1e-12
    %v1317 = vmax.f32 %v1269, 1e-12
    %v1318 = vmax.f32 %v1270, 1e-12
    %v1319 = vmax.f32 %v1271, 1e-12
    %v1320 = vmax.f32 %v1272, 1e-12
    %v1321 = vmax.f32 %v1273, 1e-12
    %v1322 = vmax.f32 %v1274, 1e-12
    %v1323 = vmax.f32 %v1275, 1e-12
    %v1324 = vrsqrt.pop %v1308
    %v1325 = vmul.f32 %v1308, %v1324
    %vm1326 = vcmp.eq.f32.partialorder %v1308, inf
    %v1327 = vsel %vm1326, %v1308, %v1325
    %vm1328 = vcmp.eq.f32.partialorder %v1308, 0.0
    %v1329 = vand.u32 %v1308, 2147483648
    %v1330 = vsel %vm1328, %v1329, %v1327
    %v1331 = vrsqrt.pop %v1309
    %v1332 = vmul.f32 %v1309, %v1331
    %vm1333 = vcmp.eq.f32.partialorder %v1309, inf
    %v1334 = vsel %vm1333, %v1309, %v1332
    %vm1335 = vcmp.eq.f32.partialorder %v1309, 0.0
    %v1336 = vand.u32 %v1309, 2147483648
    %v1337 = vsel %vm1335, %v1336, %v1334
    %v1338 = vrsqrt.pop %v1310
    %v1339 = vmul.f32 %v1310, %v1338
    %vm1340 = vcmp.eq.f32.partialorder %v1310, inf
    %v1341 = vsel %vm1340, %v1310, %v1339
    %vm1342 = vcmp.eq.f32.partialorder %v1310, 0.0
    %v1343 = vand.u32 %v1310, 2147483648
    %v1344 = vsel %vm1342, %v1343, %v1341
    %v1345 = vrsqrt.pop %v1311
    %v1346 = vmul.f32 %v1311, %v1345
    %vm1347 = vcmp.eq.f32.partialorder %v1311, inf
    %v1348 = vsel %vm1347, %v1311, %v1346
    %vm1349 = vcmp.eq.f32.partialorder %v1311, 0.0
    %v1350 = vand.u32 %v1311, 2147483648
    %v1351 = vsel %vm1349, %v1350, %v1348
    %v1352 = vrsqrt.pop %v1312
    %v1353 = vmul.f32 %v1312, %v1352
    %vm1354 = vcmp.eq.f32.partialorder %v1312, inf
    %v1355 = vsel %vm1354, %v1312, %v1353
    %vm1356 = vcmp.eq.f32.partialorder %v1312, 0.0
    %v1357 = vand.u32 %v1312, 2147483648
    %v1358 = vsel %vm1356, %v1357, %v1355
    %v1359 = vrsqrt.pop %v1313
    %v1360 = vmul.f32 %v1313, %v1359
    %vm1361 = vcmp.eq.f32.partialorder %v1313, inf
    %v1362 = vsel %vm1361, %v1313, %v1360
    %vm1363 = vcmp.eq.f32.partialorder %v1313, 0.0
    %v1364 = vand.u32 %v1313, 2147483648
    %v1365 = vsel %vm1363, %v1364, %v1362
    %v1366 = vrsqrt.pop %v1314
    %v1367 = vmul.f32 %v1314, %v1366
    %vm1368 = vcmp.eq.f32.partialorder %v1314, inf
    %v1369 = vsel %vm1368, %v1314, %v1367
    %vm1370 = vcmp.eq.f32.partialorder %v1314, 0.0
    %v1371 = vand.u32 %v1314, 2147483648
    %v1372 = vsel %vm1370, %v1371, %v1369
    %v1373 = vrsqrt.pop %v1315
    %v1374 = vmul.f32 %v1315, %v1373
    %vm1375 = vcmp.eq.f32.partialorder %v1315, inf
    %v1376 = vsel %vm1375, %v1315, %v1374
    %vm1377 = vcmp.eq.f32.partialorder %v1315, 0.0
    %v1378 = vand.u32 %v1315, 2147483648
    %v1379 = vsel %vm1377, %v1378, %v1376
    %v1380 = vrsqrt.pop %v1316
    %v1381 = vmul.f32 %v1316, %v1380
    %vm1382 = vcmp.eq.f32.partialorder %v1316, inf
    %v1383 = vsel %vm1382, %v1316, %v1381
    %vm1384 = vcmp.eq.f32.partialorder %v1316, 0.0
    %v1385 = vand.u32 %v1316, 2147483648
    %v1386 = vsel %vm1384, %v1385, %v1383
    %v1387 = vrsqrt.pop %v1317
    %v1388 = vmul.f32 %v1317, %v1387
    %vm1389 = vcmp.eq.f32.partialorder %v1317, inf
    %v1390 = vsel %vm1389, %v1317, %v1388
    %vm1391 = vcmp.eq.f32.partialorder %v1317, 0.0
    %v1392 = vand.u32 %v1317, 2147483648
    %v1393 = vsel %vm1391, %v1392, %v1390
    %v1394 = vrsqrt.pop %v1318
    %v1395 = vmul.f32 %v1318, %v1394
    %vm1396 = vcmp.eq.f32.partialorder %v1318, inf
    %v1397 = vsel %vm1396, %v1318, %v1395
    %vm1398 = vcmp.eq.f32.partialorder %v1318, 0.0
    %v1399 = vand.u32 %v1318, 2147483648
    %v1400 = vsel %vm1398, %v1399, %v1397
    %v1401 = vrsqrt.pop %v1319
    %v1402 = vmul.f32 %v1319, %v1401
    %vm1403 = vcmp.eq.f32.partialorder %v1319, inf
    %v1404 = vsel %vm1403, %v1319, %v1402
    %vm1405 = vcmp.eq.f32.partialorder %v1319, 0.0
    %v1406 = vand.u32 %v1319, 2147483648
    %v1407 = vsel %vm1405, %v1406, %v1404
    %v1408 = vrsqrt.pop %v1320
    %v1409 = vmul.f32 %v1320, %v1408
    %vm1410 = vcmp.eq.f32.partialorder %v1320, inf
    %v1411 = vsel %vm1410, %v1320, %v1409
    %vm1412 = vcmp.eq.f32.partialorder %v1320, 0.0
    %v1413 = vand.u32 %v1320, 2147483648
    %v1414 = vsel %vm1412, %v1413, %v1411
    %v1415 = vrsqrt.pop %v1321
    %v1416 = vmul.f32 %v1321, %v1415
    %vm1417 = vcmp.eq.f32.partialorder %v1321, inf
    %v1418 = vsel %vm1417, %v1321, %v1416
    %vm1419 = vcmp.eq.f32.partialorder %v1321, 0.0
    %v1420 = vand.u32 %v1321, 2147483648
    %v1421 = vsel %vm1419, %v1420, %v1418
    %v1422 = vrsqrt.pop %v1322
    %v1423 = vmul.f32 %v1322, %v1422
    %vm1424 = vcmp.eq.f32.partialorder %v1322, inf
    %v1425 = vsel %vm1424, %v1322, %v1423
    %vm1426 = vcmp.eq.f32.partialorder %v1322, 0.0
    %v1427 = vand.u32 %v1322, 2147483648
    %v1428 = vsel %vm1426, %v1427, %v1425
    %v1429 = vrsqrt.pop %v1323
    %v1430 = vmul.f32 %v1323, %v1429
    %vm1431 = vcmp.eq.f32.partialorder %v1323, inf
    %v1432 = vsel %vm1431, %v1323, %v1430
    %vm1433 = vcmp.eq.f32.partialorder %v1323, 0.0
    %v1434 = vand.u32 %v1323, 2147483648
    %v1435 = vsel %vm1433, %v1434, %v1432
    %v1436 = vsel %vm1292, %v1330, 0.0
    %v1437 = vsel %vm1293, %v1337, 0.0
    %v1438 = vsel %vm1294, %v1344, 0.0
    %v1439 = vsel %vm1295, %v1351, 0.0
    %v1440 = vsel %vm1296, %v1358, 0.0
    %v1441 = vsel %vm1297, %v1365, 0.0
    %v1442 = vsel %vm1298, %v1372, 0.0
    %v1443 = vsel %vm1299, %v1379, 0.0
    %v1444 = vsel %vm1300, %v1386, 0.0
    %v1445 = vsel %vm1301, %v1393, 0.0
    %v1446 = vsel %vm1302, %v1400, 0.0
    %v1447 = vsel %vm1303, %v1407, 0.0
    %v1448 = vsel %vm1304, %v1414, 0.0
    %v1449 = vsel %vm1305, %v1421, 0.0
    %v1450 = vsel %vm1306, %v1428, 0.0
    %v1451 = vsel %vm1307, %v1435, 0.0
    %v1452 = vrsqrt.pop %v1276
    %v1453 = vmul.f32 %v1276, %v1452
    %vm1454 = vcmp.eq.f32.partialorder %v1276, inf
    %v1455 = vsel %vm1454, %v1276, %v1453
    %vm1456 = vcmp.eq.f32.partialorder %v1276, 0.0
    %v1457 = vand.u32 %v1276, 2147483648
    %v1458 = vsel %vm1456, %v1457, %v1455
    %v1459 = vrsqrt.pop %v1277
    %v1460 = vmul.f32 %v1277, %v1459
    %vm1461 = vcmp.eq.f32.partialorder %v1277, inf
    %v1462 = vsel %vm1461, %v1277, %v1460
    %vm1463 = vcmp.eq.f32.partialorder %v1277, 0.0
    %v1464 = vand.u32 %v1277, 2147483648
    %v1465 = vsel %vm1463, %v1464, %v1462
    %v1466 = vrsqrt.pop %v1278
    %v1467 = vmul.f32 %v1278, %v1466
    %vm1468 = vcmp.eq.f32.partialorder %v1278, inf
    %v1469 = vsel %vm1468, %v1278, %v1467
    %vm1470 = vcmp.eq.f32.partialorder %v1278, 0.0
    %v1471 = vand.u32 %v1278, 2147483648
    %v1472 = vsel %vm1470, %v1471, %v1469
    %v1473 = vrsqrt.pop %v1279
    %v1474 = vmul.f32 %v1279, %v1473
    %vm1475 = vcmp.eq.f32.partialorder %v1279, inf
    %v1476 = vsel %vm1475, %v1279, %v1474
    %vm1477 = vcmp.eq.f32.partialorder %v1279, 0.0
    %v1478 = vand.u32 %v1279, 2147483648
    %v1479 = vsel %vm1477, %v1478, %v1476
    %v1480 = vrsqrt.pop %v1280
    %v1481 = vmul.f32 %v1280, %v1480
    %vm1482 = vcmp.eq.f32.partialorder %v1280, inf
    %v1483 = vsel %vm1482, %v1280, %v1481
    %vm1484 = vcmp.eq.f32.partialorder %v1280, 0.0
    %v1485 = vand.u32 %v1280, 2147483648
    %v1486 = vsel %vm1484, %v1485, %v1483
    %v1487 = vrsqrt.pop %v1281
    %v1488 = vmul.f32 %v1281, %v1487
    %vm1489 = vcmp.eq.f32.partialorder %v1281, inf
    %v1490 = vsel %vm1489, %v1281, %v1488
    %vm1491 = vcmp.eq.f32.partialorder %v1281, 0.0
    %v1492 = vand.u32 %v1281, 2147483648
    %v1493 = vsel %vm1491, %v1492, %v1490
    %v1494 = vrsqrt.pop %v1282
    %v1495 = vmul.f32 %v1282, %v1494
    %vm1496 = vcmp.eq.f32.partialorder %v1282, inf
    %v1497 = vsel %vm1496, %v1282, %v1495
    %vm1498 = vcmp.eq.f32.partialorder %v1282, 0.0
    %v1499 = vand.u32 %v1282, 2147483648
    %v1500 = vsel %vm1498, %v1499, %v1497
    %v1501 = vrsqrt.pop %v1283
    %v1502 = vmul.f32 %v1283, %v1501
    %vm1503 = vcmp.eq.f32.partialorder %v1283, inf
    %v1504 = vsel %vm1503, %v1283, %v1502
    %vm1505 = vcmp.eq.f32.partialorder %v1283, 0.0
    %v1506 = vand.u32 %v1283, 2147483648
    %v1507 = vsel %vm1505, %v1506, %v1504
    %v1508 = vrsqrt.pop %v1284
    %v1509 = vmul.f32 %v1284, %v1508
    %vm1510 = vcmp.eq.f32.partialorder %v1284, inf
    %v1511 = vsel %vm1510, %v1284, %v1509
    %vm1512 = vcmp.eq.f32.partialorder %v1284, 0.0
    %v1513 = vand.u32 %v1284, 2147483648
    %v1514 = vsel %vm1512, %v1513, %v1511
    %v1515 = vrsqrt.pop %v1285
    %v1516 = vmul.f32 %v1285, %v1515
    %vm1517 = vcmp.eq.f32.partialorder %v1285, inf
    %v1518 = vsel %vm1517, %v1285, %v1516
    %vm1519 = vcmp.eq.f32.partialorder %v1285, 0.0
    %v1520 = vand.u32 %v1285, 2147483648
    %v1521 = vsel %vm1519, %v1520, %v1518
    %v1522 = vrsqrt.pop %v1286
    %v1523 = vmul.f32 %v1286, %v1522
    %vm1524 = vcmp.eq.f32.partialorder %v1286, inf
    %v1525 = vsel %vm1524, %v1286, %v1523
    %vm1526 = vcmp.eq.f32.partialorder %v1286, 0.0
    %v1527 = vand.u32 %v1286, 2147483648
    %v1528 = vsel %vm1526, %v1527, %v1525
    %v1529 = vrsqrt.pop %v1287
    %v1530 = vmul.f32 %v1287, %v1529
    %vm1531 = vcmp.eq.f32.partialorder %v1287, inf
    %v1532 = vsel %vm1531, %v1287, %v1530
    %vm1533 = vcmp.eq.f32.partialorder %v1287, 0.0
    %v1534 = vand.u32 %v1287, 2147483648
    %v1535 = vsel %vm1533, %v1534, %v1532
    %v1536 = vrsqrt.pop %v1288
    %v1537 = vmul.f32 %v1288, %v1536
    %vm1538 = vcmp.eq.f32.partialorder %v1288, inf
    %v1539 = vsel %vm1538, %v1288, %v1537
    %vm1540 = vcmp.eq.f32.partialorder %v1288, 0.0
    %v1541 = vand.u32 %v1288, 2147483648
    %v1542 = vsel %vm1540, %v1541, %v1539
    %v1543 = vrsqrt.pop %v1289
    %v1544 = vmul.f32 %v1289, %v1543
    %vm1545 = vcmp.eq.f32.partialorder %v1289, inf
    %v1546 = vsel %vm1545, %v1289, %v1544
    %vm1547 = vcmp.eq.f32.partialorder %v1289, 0.0
    %v1548 = vand.u32 %v1289, 2147483648
    %v1549 = vsel %vm1547, %v1548, %v1546
    %v1550 = vrsqrt.pop %v1290
    %v1551 = vmul.f32 %v1290, %v1550
    %vm1552 = vcmp.eq.f32.partialorder %v1290, inf
    %v1553 = vsel %vm1552, %v1290, %v1551
    %vm1554 = vcmp.eq.f32.partialorder %v1290, 0.0
    %v1555 = vand.u32 %v1290, 2147483648
    %v1556 = vsel %vm1554, %v1555, %v1553
    %v1557 = vrsqrt.pop %v1291
    %v1558 = vmul.f32 %v1291, %v1557
    %vm1559 = vcmp.eq.f32.partialorder %v1291, inf
    %v1560 = vsel %vm1559, %v1291, %v1558
    %vm1561 = vcmp.eq.f32.partialorder %v1291, 0.0
    %v1562 = vand.u32 %v1291, 2147483648
    %v1563 = vsel %vm1561, %v1562, %v1560
    %v1564 = vsub.f32 %v1436, %v1458
    %v1565 = vsub.f32 %v1437, %v1465
    %v1566 = vsub.f32 %v1438, %v1472
    %v1567 = vsub.f32 %v1439, %v1479
    %v1568 = vsub.f32 %v1440, %v1486
    %v1569 = vsub.f32 %v1441, %v1493
    %v1570 = vsub.f32 %v1442, %v1500
    %v1571 = vsub.f32 %v1443, %v1507
    %v1572 = vsub.f32 %v1444, %v1514
    %v1573 = vsub.f32 %v1445, %v1521
    %v1574 = vsub.f32 %v1446, %v1528
    %v1575 = vsub.f32 %v1447, %v1535
    %v1576 = vsub.f32 %v1448, %v1542
    %v1577 = vsub.f32 %v1449, %v1549
    %v1578 = vsub.f32 %v1450, %v1556
    %v1579 = vsub.f32 %v1451, %v1563
    %v1580 = vadd.f32 %v1564, 0.3
    %v1581 = vadd.f32 %v1565, 0.3
    %v1582 = vadd.f32 %v1566, 0.3
    %v1583 = vadd.f32 %v1567, 0.3
    %v1584 = vadd.f32 %v1568, 0.3
    %v1585 = vadd.f32 %v1569, 0.3
    %v1586 = vadd.f32 %v1570, 0.3
    %v1587 = vadd.f32 %v1571, 0.3
    %v1588 = vadd.f32 %v1572, 0.3
    %v1589 = vadd.f32 %v1573, 0.3
    %v1590 = vadd.f32 %v1574, 0.3
    %v1591 = vadd.f32 %v1575, 0.3
    %v1592 = vadd.f32 %v1576, 0.3
    %v1593 = vadd.f32 %v1577, 0.3
    %v1594 = vadd.f32 %v1578, 0.3
    %v1595 = vadd.f32 %v1579, 0.3
    %v1596 = vmax.f32 %v1580, 0.0
    %v1597 = vmax.f32 %v1581, 0.0
    %v1598 = vmax.f32 %v1582, 0.0
    %v1599 = vmax.f32 %v1583, 0.0
    %v1600 = vmax.f32 %v1584, 0.0
    %v1601 = vmax.f32 %v1585, 0.0
    %v1602 = vmax.f32 %v1586, 0.0
    %v1603 = vmax.f32 %v1587, 0.0
    %v1604 = vmax.f32 %v1588, 0.0
    %v1605 = vmax.f32 %v1589, 0.0
    %v1606 = vmax.f32 %v1590, 0.0
    %v1607 = vmax.f32 %v1591, 0.0
    %v1608 = vmax.f32 %v1592, 0.0
    %v1609 = vmax.f32 %v1593, 0.0
    %v1610 = vmax.f32 %v1594, 0.0
    %v1611 = vmax.f32 %v1595, 0.0
    %1612 = vst.msk [vmem:[%s4] sm:$0xff] %vm1144, %v1596
    %1613 = vst.msk [vmem:[%s4 + $0x8] sm:$0xff] %vm1144, %v1597
    %1614 = vst.msk [vmem:[%s4 + $0x10] sm:$0xff] %vm1144, %v1598
    %1615 = vst.msk [vmem:[%s4 + $0x18] sm:$0xff] %vm1144, %v1599
    %1616 = vst.msk [vmem:[%s4 + $0x20] sm:$0xff] %vm1144, %v1600
    %1617 = vst.msk [vmem:[%s4 + $0x28] sm:$0xff] %vm1144, %v1601
    %1618 = vst.msk [vmem:[%s4 + $0x30] sm:$0xff] %vm1144, %v1602
    %1619 = vst.msk [vmem:[%s4 + $0x38] sm:$0xff] %vm1144, %v1603
    %1620 = vst.msk [vmem:[%s4 + $0x40] sm:$0xff] %vm1144, %v1604
    %1621 = vst.msk [vmem:[%s4 + $0x48] sm:$0xff] %vm1144, %v1605
    %1622 = vst.msk [vmem:[%s4 + $0x50] sm:$0xff] %vm1144, %v1606
    %1623 = vst.msk [vmem:[%s4 + $0x58] sm:$0xff] %vm1144, %v1607
    %1624 = vst.msk [vmem:[%s4 + $0x60] sm:$0xff] %vm1144, %v1608
    %1625 = vst.msk [vmem:[%s4 + $0x68] sm:$0xff] %vm1144, %v1609
    %1626 = vst.msk [vmem:[%s4 + $0x70] sm:$0xff] %vm1144, %v1610
    %1627 = vst.msk [vmem:[%s4 + $0x78] sm:$0xff] %vm1144, %v1611
  $region25: #{tpu_custom_call.1} parent=0 // pred_fallthru
    _
  // Predicated region
  $region26: #{tpu_custom_call.1} parent=0 // pred_check
    _
  $region27: #{tpu_custom_call.1} parent=0 // pred_check_branch
    %1629 = sbr.rel (0) target = $region29
  $region28: #{tpu_custom_call.1} parent=0 // pred_region
    _
  $region29: #{tpu_custom_call.1} parent=0 // pred_fallthru
    _
  // Predicated region
  $region30: #{tpu_custom_call.1} parent=0 // pred_check
    _
  $region31: #{tpu_custom_call.1} parent=0 // pred_check_branch
    %1631 = sbr.rel (0) target = $region33
  $region32: #{tpu_custom_call.1} parent=0 // pred_region
    _
  $region33: #{tpu_custom_call.1} parent=0 // pred_fallthru
    _

</llo_original>
